<compile_context>
chip_gen: v7x
topology: tpu7x:2x2x1
jax: 0.10.0
libtpu: 0.0.40
codegen_flags: <defaults>
</compile_context>

<pallas_src>
import jax
import jax.numpy as jnp
from jax import lax
from jax.experimental import pallas as pl
from jax.experimental.pallas import tpu as pltpu

# ---- model geometry (fixed by the module: dense expects 16 * 95 features) ----
SEQ_LEN = 1536                      # (1536-8)//4+1=383 -> (383-4)//2+1=190 -> (190-2)//2+1=95
C1, K1, S1 = 4, 8, 4
C2, K2, S2 = 8, 4, 2
C3, K3, S3 = 16, 2, 2
T1 = (SEQ_LEN - K1) // S1 + 1       # 383
T2 = (T1 - K2) // S2 + 1            # 190
T3 = (T2 - K3) // S3 + 1            # 95
FEAT = C3 * T3                      # 1520 == 16 * 95
NBLK = SEQ_LEN // 128               # 12 blocks of 128 lanes per layer
ACT = NBLK * 128                    # 1536 padded feature width


def _round_up(v, m):
    return (v + m - 1) // m * m


# ----------------------------- Pallas kernel ---------------------------------
def pcm_kernel(x_ref, wp1_ref, b1_ref, wp2_ref, b2_ref, w3_ref, b3_ref,
               wd_ref, bd_ref, out_ref, z_ref):
    bt = x_ref.shape[1]
    a = x_ref[...]                                       # (NBLK, bt, 128) f32
    zero_blk = jnp.zeros((1, bt, 128), jnp.float32)

    # conv1 / conv2: one fused bf16 MXU matmul per layer with a packed
    # (128, 256) weight; out_block[m] = Y_top[m] + Y_bot[m+1] (+bias, ReLU).
    for wp_ref, b_ref in ((wp1_ref, b1_ref), (wp2_ref, b2_ref)):
        x2d = a.reshape(NBLK * bt, 128).astype(jnp.bfloat16)
        y = jnp.dot(x2d, wp_ref[...], preferred_element_type=jnp.float32)
        y = y.reshape(NBLK, bt, 256)
        y_top = y[:, :, :128]
        y_bot = jnp.concatenate([y[1:, :, 128:], zero_blk], axis=0)
        a = jnp.maximum(y_top + y_bot + b_ref[...].reshape(1, 1, 128), 0.0)

    # conv3: every output block reads only its own input block -> (128,128) weight.
    x2d = a.reshape(NBLK * bt, 128).astype(jnp.bfloat16)
    y = jnp.dot(x2d, w3_ref[...], preferred_element_type=jnp.float32)
    a = jnp.maximum(y.reshape(NBLK, bt, 128) + b3_ref[...].reshape(1, 1, 128), 0.0)

    # relayout (NBLK, bt, 128) -> (bt, NBLK*128) via 12 aligned lane-slice
    # stores into VMEM scratch (replaces the old per-block concatenations).
    for m in range(NBLK):
        z_ref[:, m * 128:(m + 1) * 128] = a[m]

    # dense: single bf16 matmul, f32 accumulation, lane-dense output store.
    out_ref[...] = (
        jnp.dot(z_ref[...].astype(jnp.bfloat16), wd_ref[...],
                preferred_element_type=jnp.float32)
        + bd_ref[...])


def prior_constraint_forward(x, p):
    """x: (B, SEQ_LEN) f32  ->  (B, num_hpo_node) f32."""
    B, L = x.shape
    assert L == SEQ_LEN, "dense layer hard-codes 16*95 features -> L must be 1536"
    n_pad = p["wd"].shape[1]                      # multiple of 128
    n_valid = p["n_valid"]

    # batch tiling: pad to sublane granularity (8), cap tile at 128 rows.
    bt = 128 if B >= 128 else _round_up(B, 8)
    Bp = _round_up(B, bt)

    # N tiling: largest power-of-two tile (<=2048) dividing n_pad; if that
    # leaves a (1,1) grid, split N in two so v7x can use both TensorCores.
    tn = 128
    for cand in (2048, 1024, 512, 256, 128):
        if n_pad % cand == 0:
            tn = cand
            break
    if Bp // bt == 1 and n_pad // tn == 1 and n_pad % 256 == 0:
        tn = n_pad // 2
    grid = (Bp // bt, n_pad // tn)

    # (B, L) -> (NBLK, Bp, 128): block-major, batch on sublanes (zero-padded).
    xp = jnp.zeros((Bp, L), x.dtype).at[:B].set(x)
    x3 = xp.reshape(Bp, NBLK, 128).transpose(1, 0, 2)

    def full(arr):                   # whole-array constant block (weights / biases)
        return pl.BlockSpec(arr.shape, lambda i, j, nd=arr.ndim: (0,) * nd)

    flops = (grid[1] * 2 * Bp * NBLK * 128 * (256 + 256 + 128)   # convs (recomputed per N tile)
             + 2 * Bp * ACT * n_pad)                              # dense
    bytes_accessed = (Bp * L * 4 + Bp * n_pad * 4 + ACT * n_pad * 2
                      + 2 * 128 * 256 * 2 + 128 * 128 * 2 + 3 * 128 * 4
                      + n_pad * 4)

    out = pl.pallas_call(
        pcm_kernel,
        out_shape=jax.ShapeDtypeStruct((Bp, n_pad), jnp.float32),
        grid=grid,
        in_specs=[
            pl.BlockSpec((NBLK, bt, 128), lambda i, j: (0, i, 0)),
            full(p["wp1"]), full(p["b1"]),
            full(p["wp2"]), full(p["b2"]),
            full(p["w3"]), full(p["b3"]),
            pl.BlockSpec((ACT, tn), lambda i, j: (0, j)),
            pl.BlockSpec((1, tn), lambda i, j: (0, j)),
        ],
        out_specs=pl.BlockSpec((bt, tn), lambda i, j: (i, j)),
        scratch_shapes=[pltpu.VMEM((bt, ACT), jnp.float32)],
        compiler_params=pltpu.CompilerParams(
            dimension_semantics=("parallel", "parallel")),
        cost_estimate=pl.CostEstimate(
            flops=flops, transcendentals=0, bytes_accessed=bytes_accessed),
    )(x3, p["wp1"], p["b1"], p["wp2"], p["b2"], p["w3"], p["b3"],
      p["wd"], p["bd"])
    return out[:B, :n_valid]


# ----------------------- glue: parameters & conv lowering ---------------------
def conv_block_weight(w, stride):
    """Lower Conv1d(w:(Cout,Cin,K), stride) to a (256,128) block-banded weight.

    Output lane r*Cout+co of an output block reads window lanes
    p = (stride*r + k)*Cin + ci of the 2-block (256-lane) input window, so
    W[p, r*Cout+co] = w[co, ci, k] where k = p//Cin - stride*r (0 <= k < K).
    """
    c_out, c_in, k = w.shape
    t_out = 128 // c_out
    p = jnp.arange(256)
    r = jnp.arange(t_out)
    tap = p[:, None] // c_in - stride * r[None, :]            # (256, t_out)
    ci = p[:, None] % c_in                                     # (256, 1)
    valid = (tap >= 0) & (tap < k)
    w_cin_k_cout = jnp.transpose(w, (1, 2, 0))                 # (c_in, k, c_out)
    vals = w_cin_k_cout[ci, jnp.clip(tap, 0, k - 1)]           # (256, t_out, c_out)
    vals = jnp.where(valid[:, :, None], vals, 0.0)
    return vals.reshape(256, 128).astype(jnp.float32)


def init_params(key, num_hpo_node, initializer_range=0.02):
    ks = jax.random.split(key, 7)
    w1 = jax.random.normal(ks[0], (C1, 1, K1), jnp.float32) * (1 * K1) ** -0.5
    b1 = jax.random.normal(ks[1], (C1,), jnp.float32) * 0.05
    w2 = jax.random.normal(ks[2], (C2, C1, K2), jnp.float32) * (C1 * K2) ** -0.5
    b2 = jax.random.normal(ks[3], (C2,), jnp.float32) * 0.05
    w3 = jax.random.normal(ks[4], (C3, C2, K3), jnp.float32) * (C2 * K3) ** -0.5
    b3 = jax.random.normal(ks[5], (C3,), jnp.float32) * 0.05
    # nn.Linear: weight ~ N(0, initializer_range), bias zeroed (per init_weights)
    wd = jax.random.normal(ks[6], (num_hpo_node, FEAT), jnp.float32) * initializer_range
    bd = jnp.zeros((num_hpo_node,), jnp.float32)
    return dict(w1=w1, b1=b1, w2=w2, b2=b2, w3=w3, b3=b3, wd=wd, bd=bd)


def build_kernel_params(raw):
    w1f = conv_block_weight(raw["w1"], S1)                    # (256, 128)
    w2f = conv_block_weight(raw["w2"], S2)                    # (256, 128)
    w3f = conv_block_weight(raw["w3"], S3)                    # (256, 128)
    # conv3 never reaches the next block (max window lane (2*7+1)*8+7 = 127)
    assert bool(jnp.all(w3f[128:] == 0.0)), "conv3 geometry changed"
    # pack top/bottom halves side-by-side -> (128, 256) bf16 for conv1/conv2
    wp1 = jnp.concatenate([w1f[:128], w1f[128:]], axis=1).astype(jnp.bfloat16)
    wp2 = jnp.concatenate([w2f[:128], w2f[128:]], axis=1).astype(jnp.bfloat16)
    w3 = w3f[:128].astype(jnp.bfloat16)                       # (128, 128)
    # bias pattern repeats every 128 lanes -> one (1, 128) bias per layer
    b1 = jnp.tile(raw["b1"], 128 // C1)[None, :].astype(jnp.float32)
    b2 = jnp.tile(raw["b2"], 128 // C2)[None, :].astype(jnp.float32)
    b3 = jnp.tile(raw["b3"], 128 // C3)[None, :].astype(jnp.float32)
    n = raw["wd"].shape[0]
    n_pad = _round_up(n, 128)
    # kernel feature order is t*16+co (t=0..95, t=95 is a pad slot);
    # PyTorch flatten order is co*95+t -> permute dense weight,
    # zero-pad rows 1520..1535 and columns n..n_pad-1.
    wd = jnp.transpose(raw["wd"].reshape(n, C3, T3), (2, 1, 0)).reshape(FEAT, n)
    wd = jnp.pad(wd, ((0, ACT - FEAT), (0, n_pad - n))).astype(jnp.bfloat16)
    bd = jnp.pad(raw["bd"], (0, n_pad - n))[None, :].astype(jnp.float32)
    return dict(wp1=wp1, b1=b1, wp2=wp2, b2=b2, w3=w3, b3=b3, wd=wd, bd=bd,
                n_valid=n)


# ------------------------------ pure-JAX reference ----------------------------
def conv1d_ref(x, w, b, stride):
    # x: (B, Cin, L)  w: (Cout, Cin, K)  -> (B, Cout, T_out)
    k = w.shape[-1]
    t_out = (x.shape[-1] - k) // stride + 1
    idx = jnp.arange(t_out)[:, None] * stride + jnp.arange(k)[None, :]
    patches = x[:, :, idx]                                    # (B, Cin, T, K)
    return (jnp.einsum("bctk,ock->bot", patches, w,
                       precision=lax.Precision.HIGHEST)
            + b[None, :, None])


def reference_forward(x, raw):
    z = x[:, None, :]                                         # unsqueeze(dim=1) -> NCW
    z = jax.nn.relu(conv1d_ref(z, raw["w1"], raw["b1"], S1))
    z = jax.nn.relu(conv1d_ref(z, raw["w2"], raw["b2"], S2))
    z = jax.nn.relu(conv1d_ref(z, raw["w3"], raw["b3"], S3))
    z = z.reshape(z.shape[0], -1)                             # channel-major flatten
    return (jnp.dot(z, raw["wd"].T, precision=lax.Precision.HIGHEST)
            + raw["bd"][None, :])


# ----------------------------------- main -------------------------------------
if __name__ == "__main__":
    key = jax.random.PRNGKey(0)
    k_x, k_p = jax.random.split(key)
    B, NUM_HPO_NODE = 2, 128

    x = jax.random.normal(k_x, (B, SEQ_LEN), jnp.float32)     # hpo_latent
    raw = init_params(k_p, NUM_HPO_NODE)
    kparams = build_kernel_params(raw)

    out = prior_constraint_forward(x, kparams)
    out = jax.block_until_ready(out)

    ref = reference_forward(x, raw)
    assert out.shape == (B, NUM_HPO_NODE) and out.dtype == jnp.float32
    max_err = float(jnp.max(jnp.abs(out - ref)))
    # convs + dense run with bf16 operands (f32 accumulation) -> rounding slack
    if max_err > 5e-2:
        raise AssertionError(f"kernel mismatch vs reference: max abs err = {max_err}")
    print("KERNEL_OK")
</pallas_src>

<mosaic_0001>
module attributes {stable_mosaic.version = 11 : i64} {
  func.func @pcm_kernel(%arg0: i32, %arg1: i32, %arg2: memref<12x8x128xf32, #tpu.memory_space<vmem>>, %arg3: memref<128x256xbf16, #tpu.memory_space<vmem>>, %arg4: memref<1x128xf32, #tpu.memory_space<vmem>>, %arg5: memref<128x256xbf16, #tpu.memory_space<vmem>>, %arg6: memref<1x128xf32, #tpu.memory_space<vmem>>, %arg7: memref<128x128xbf16, #tpu.memory_space<vmem>>, %arg8: memref<1x128xf32, #tpu.memory_space<vmem>>, %arg9: memref<1536x128xbf16, #tpu.memory_space<vmem>>, %arg10: memref<1x128xf32, #tpu.memory_space<vmem>>, %arg11: memref<8x128xf32, #tpu.memory_space<vmem>>, %arg12: memref<8x1536xf32, #tpu.memory_space<vmem>>) attributes {dimension_semantics = [#tpu.dimension_semantics<parallel>, #tpu.dimension_semantics<parallel>], iteration_bounds = array<i64: 1, 1>, scalar_prefetch = 0 : i64, scratch_operands = 1 : i64, tpu.core_type = #tpu.core_type<tc>, window_params = [{transform_indices = @transform_0, window_bounds = array<i64: 12, 8, 128>}, {pipeline_mode = #tpu.pipeline_mode<synchronous>, transform_indices = @transform_1, window_bounds = array<i64: 128, 256>}, {pipeline_mode = #tpu.pipeline_mode<synchronous>, transform_indices = @transform_2, window_bounds = array<i64: 1, 128>}, {pipeline_mode = #tpu.pipeline_mode<synchronous>, transform_indices = @transform_3, window_bounds = array<i64: 128, 256>}, {pipeline_mode = #tpu.pipeline_mode<synchronous>, transform_indices = @transform_4, window_bounds = array<i64: 1, 128>}, {pipeline_mode = #tpu.pipeline_mode<synchronous>, transform_indices = @transform_5, window_bounds = array<i64: 128, 128>}, {pipeline_mode = #tpu.pipeline_mode<synchronous>, transform_indices = @transform_6, window_bounds = array<i64: 1, 128>}, {transform_indices = @transform_7, window_bounds = array<i64: 1536, 128>}, {transform_indices = @transform_8, window_bounds = array<i64: 1, 128>}, {transform_indices = @transform_9, window_bounds = array<i64: 8, 128>}]} {
    %c0 = arith.constant 0 : index
    %c0_0 = arith.constant 0 : index
    %c0_1 = arith.constant 0 : index
    %0 = vector.load %arg2[%c0, %c0_0, %c0_1] : memref<12x8x128xf32, #tpu.memory_space<vmem>>, vector<12x8x128xf32>
    %cst = arith.constant 0.000000e+00 : f32
    %1 = vector.broadcast %cst : f32 to vector<1x8x128xf32>
    %2 = vector.shape_cast %0 : vector<12x8x128xf32> to vector<96x128xf32>
    %3 = arith.truncf %2 : vector<96x128xf32> to vector<96x128xbf16>
    %c0_2 = arith.constant 0 : index
    %c0_3 = arith.constant 0 : index
    %4 = vector.load %arg3[%c0_2, %c0_3] : memref<128x256xbf16, #tpu.memory_space<vmem>>, vector<128x256xbf16>
    %cst_4 = arith.constant dense<0.000000e+00> : vector<96x256xf32>
    %5 = tpu.matmul %3, %4, %cst_4 {dimension_numbers = #tpu.dot_dimension_numbers<[1], [0], [0], [1], [0, 0, 1, 1], [], []>} : vector<96x128xbf16>, vector<128x256xbf16>, vector<96x256xf32> -> vector<96x256xf32>
    %6 = vector.shape_cast %5 : vector<96x256xf32> to vector<12x8x256xf32>
    %7 = vector.extract_strided_slice %6 {offsets = [0, 0, 0], sizes = [12, 8, 128], strides = [1, 1, 1]} : vector<12x8x256xf32> to vector<12x8x128xf32>
    %8 = vector.extract_strided_slice %6 {offsets = [1, 0, 128], sizes = [11, 8, 128], strides = [1, 1, 1]} : vector<12x8x256xf32> to vector<11x8x128xf32>
    %9 = tpu.concatenate %8, %1 in 0 : vector<11x8x128xf32>, vector<1x8x128xf32> -> vector<12x8x128xf32>
    %10 = arith.addf %7, %9 : vector<12x8x128xf32>
    %c0_5 = arith.constant 0 : index
    %c0_6 = arith.constant 0 : index
    %11 = vector.load %arg4[%c0_5, %c0_6] : memref<1x128xf32, #tpu.memory_space<vmem>>, vector<1x128xf32>
    %12 = vector.shape_cast %11 : vector<1x128xf32> to vector<1x1x128xf32>
    %13 = vector.broadcast %12 : vector<1x1x128xf32> to vector<12x8x128xf32>
    %14 = arith.addf %10, %13 : vector<12x8x128xf32>
    %cst_7 = arith.constant 0.000000e+00 : f32
    %15 = vector.broadcast %cst_7 : f32 to vector<12x8x128xf32>
    %16 = arith.maximumf %14, %15 : vector<12x8x128xf32>
    %17 = vector.shape_cast %16 : vector<12x8x128xf32> to vector<96x128xf32>
    %18 = arith.truncf %17 : vector<96x128xf32> to vector<96x128xbf16>
    %c0_8 = arith.constant 0 : index
    %c0_9 = arith.constant 0 : index
    %19 = vector.load %arg5[%c0_8, %c0_9] : memref<128x256xbf16, #tpu.memory_space<vmem>>, vector<128x256xbf16>
    %cst_10 = arith.constant dense<0.000000e+00> : vector<96x256xf32>
    %20 = tpu.matmul %18, %19, %cst_10 {dimension_numbers = #tpu.dot_dimension_numbers<[1], [0], [0], [1], [0, 0, 1, 1], [], []>} : vector<96x128xbf16>, vector<128x256xbf16>, vector<96x256xf32> -> vector<96x256xf32>
    %21 = vector.shape_cast %20 : vector<96x256xf32> to vector<12x8x256xf32>
    %22 = vector.extract_strided_slice %21 {offsets = [0, 0, 0], sizes = [12, 8, 128], strides = [1, 1, 1]} : vector<12x8x256xf32> to vector<12x8x128xf32>
    %23 = vector.extract_strided_slice %21 {offsets = [1, 0, 128], sizes = [11, 8, 128], strides = [1, 1, 1]} : vector<12x8x256xf32> to vector<11x8x128xf32>
    %24 = tpu.concatenate %23, %1 in 0 : vector<11x8x128xf32>, vector<1x8x128xf32> -> vector<12x8x128xf32>
    %25 = arith.addf %22, %24 : vector<12x8x128xf32>
    %c0_11 = arith.constant 0 : index
    %c0_12 = arith.constant 0 : index
    %26 = vector.load %arg6[%c0_11, %c0_12] : memref<1x128xf32, #tpu.memory_space<vmem>>, vector<1x128xf32>
    %27 = vector.shape_cast %26 : vector<1x128xf32> to vector<1x1x128xf32>
    %28 = vector.broadcast %27 : vector<1x1x128xf32> to vector<12x8x128xf32>
    %29 = arith.addf %25, %28 : vector<12x8x128xf32>
    %cst_13 = arith.constant 0.000000e+00 : f32
    %30 = vector.broadcast %cst_13 : f32 to vector<12x8x128xf32>
    %31 = arith.maximumf %29, %30 : vector<12x8x128xf32>
    %32 = vector.shape_cast %31 : vector<12x8x128xf32> to vector<96x128xf32>
    %33 = arith.truncf %32 : vector<96x128xf32> to vector<96x128xbf16>
    %c0_14 = arith.constant 0 : index
    %c0_15 = arith.constant 0 : index
    %34 = vector.load %arg7[%c0_14, %c0_15] : memref<128x128xbf16, #tpu.memory_space<vmem>>, vector<128x128xbf16>
    %cst_16 = arith.constant dense<0.000000e+00> : vector<96x128xf32>
    %35 = tpu.matmul %33, %34, %cst_16 {dimension_numbers = #tpu.dot_dimension_numbers<[1], [0], [0], [1], [0, 0, 1, 1], [], []>} : vector<96x128xbf16>, vector<128x128xbf16>, vector<96x128xf32> -> vector<96x128xf32>
    %36 = vector.shape_cast %35 : vector<96x128xf32> to vector<12x8x128xf32>
    %c0_17 = arith.constant 0 : index
    %c0_18 = arith.constant 0 : index
    %37 = vector.load %arg8[%c0_17, %c0_18] : memref<1x128xf32, #tpu.memory_space<vmem>>, vector<1x128xf32>
    %38 = vector.shape_cast %37 : vector<1x128xf32> to vector<1x1x128xf32>
    %39 = vector.broadcast %38 : vector<1x1x128xf32> to vector<12x8x128xf32>
    %40 = arith.addf %36, %39 : vector<12x8x128xf32>
    %cst_19 = arith.constant 0.000000e+00 : f32
    %41 = vector.broadcast %cst_19 : f32 to vector<12x8x128xf32>
    %42 = arith.maximumf %40, %41 : vector<12x8x128xf32>
    %43 = vector.extract_strided_slice %42 {offsets = [0, 0, 0], sizes = [1, 8, 128], strides = [1, 1, 1]} : vector<12x8x128xf32> to vector<1x8x128xf32>
    %44 = vector.shape_cast %43 : vector<1x8x128xf32> to vector<8x128xf32>
    %c0_20 = arith.constant 0 : index
    %c0_21 = arith.constant 0 : index
    %45 = vector.load %arg12[%c0_20, %c0_21] : memref<8x1536xf32, #tpu.memory_space<vmem>>, vector<8x128xf32>
    tpu.vector_store %arg12[%c0_20, %c0_21], %44 {strides = array<i32>} : memref<8x1536xf32, #tpu.memory_space<vmem>>, vector<8x128xf32>,
    %46 = vector.extract_strided_slice %42 {offsets = [1, 0, 0], sizes = [1, 8, 128], strides = [1, 1, 1]} : vector<12x8x128xf32> to vector<1x8x128xf32>
    %47 = vector.shape_cast %46 : vector<1x8x128xf32> to vector<8x128xf32>
    %c0_22 = arith.constant 0 : index
    %c128 = arith.constant 128 : index
    %48 = vector.load %arg12[%c0_22, %c128] : memref<8x1536xf32, #tpu.memory_space<vmem>>, vector<8x128xf32>
    tpu.vector_store %arg12[%c0_22, %c128], %47 {strides = array<i32>} : memref<8x1536xf32, #tpu.memory_space<vmem>>, vector<8x128xf32>,
    %49 = vector.extract_strided_slice %42 {offsets = [2, 0, 0], sizes = [1, 8, 128], strides = [1, 1, 1]} : vector<12x8x128xf32> to vector<1x8x128xf32>
    %50 = vector.shape_cast %49 : vector<1x8x128xf32> to vector<8x128xf32>
    %c0_23 = arith.constant 0 : index
    %c256 = arith.constant 256 : index
    %51 = vector.load %arg12[%c0_23, %c256] : memref<8x1536xf32, #tpu.memory_space<vmem>>, vector<8x128xf32>
    tpu.vector_store %arg12[%c0_23, %c256], %50 {strides = array<i32>} : memref<8x1536xf32, #tpu.memory_space<vmem>>, vector<8x128xf32>,
    %52 = vector.extract_strided_slice %42 {offsets = [3, 0, 0], sizes = [1, 8, 128], strides = [1, 1, 1]} : vector<12x8x128xf32> to vector<1x8x128xf32>
    %53 = vector.shape_cast %52 : vector<1x8x128xf32> to vector<8x128xf32>
    %c0_24 = arith.constant 0 : index
    %c384 = arith.constant 384 : index
    %54 = vector.load %arg12[%c0_24, %c384] : memref<8x1536xf32, #tpu.memory_space<vmem>>, vector<8x128xf32>
    tpu.vector_store %arg12[%c0_24, %c384], %53 {strides = array<i32>} : memref<8x1536xf32, #tpu.memory_space<vmem>>, vector<8x128xf32>,
    %55 = vector.extract_strided_slice %42 {offsets = [4, 0, 0], sizes = [1, 8, 128], strides = [1, 1, 1]} : vector<12x8x128xf32> to vector<1x8x128xf32>
    %56 = vector.shape_cast %55 : vector<1x8x128xf32> to vector<8x128xf32>
    %c0_25 = arith.constant 0 : index
    %c512 = arith.constant 512 : index
    %57 = vector.load %arg12[%c0_25, %c512] : memref<8x1536xf32, #tpu.memory_space<vmem>>, vector<8x128xf32>
    tpu.vector_store %arg12[%c0_25, %c512], %56 {strides = array<i32>} : memref<8x1536xf32, #tpu.memory_space<vmem>>, vector<8x128xf32>,
    %58 = vector.extract_strided_slice %42 {offsets = [5, 0, 0], sizes = [1, 8, 128], strides = [1, 1, 1]} : vector<12x8x128xf32> to vector<1x8x128xf32>
    %59 = vector.shape_cast %58 : vector<1x8x128xf32> to vector<8x128xf32>
    %c0_26 = arith.constant 0 : index
    %c640 = arith.constant 640 : index
    %60 = vector.load %arg12[%c0_26, %c640] : memref<8x1536xf32, #tpu.memory_space<vmem>>, vector<8x128xf32>
    tpu.vector_store %arg12[%c0_26, %c640], %59 {strides = array<i32>} : memref<8x1536xf32, #tpu.memory_space<vmem>>, vector<8x128xf32>,
    %61 = vector.extract_strided_slice %42 {offsets = [6, 0, 0], sizes = [1, 8, 128], strides = [1, 1, 1]} : vector<12x8x128xf32> to vector<1x8x128xf32>
    %62 = vector.shape_cast %61 : vector<1x8x128xf32> to vector<8x128xf32>
    %c0_27 = arith.constant 0 : index
    %c768 = arith.constant 768 : index
    %63 = vector.load %arg12[%c0_27, %c768] : memref<8x1536xf32, #tpu.memory_space<vmem>>, vector<8x128xf32>
    tpu.vector_store %arg12[%c0_27, %c768], %62 {strides = array<i32>} : memref<8x1536xf32, #tpu.memory_space<vmem>>, vector<8x128xf32>,
    %64 = vector.extract_strided_slice %42 {offsets = [7, 0, 0], sizes = [1, 8, 128], strides = [1, 1, 1]} : vector<12x8x128xf32> to vector<1x8x128xf32>
    %65 = vector.shape_cast %64 : vector<1x8x128xf32> to vector<8x128xf32>
    %c0_28 = arith.constant 0 : index
    %c896 = arith.constant 896 : index
    %66 = vector.load %arg12[%c0_28, %c896] : memref<8x1536xf32, #tpu.memory_space<vmem>>, vector<8x128xf32>
    tpu.vector_store %arg12[%c0_28, %c896], %65 {strides = array<i32>} : memref<8x1536xf32, #tpu.memory_space<vmem>>, vector<8x128xf32>,
    %67 = vector.extract_strided_slice %42 {offsets = [8, 0, 0], sizes = [1, 8, 128], strides = [1, 1, 1]} : vector<12x8x128xf32> to vector<1x8x128xf32>
    %68 = vector.shape_cast %67 : vector<1x8x128xf32> to vector<8x128xf32>
    %c0_29 = arith.constant 0 : index
    %c1024 = arith.constant 1024 : index
    %69 = vector.load %arg12[%c0_29, %c1024] : memref<8x1536xf32, #tpu.memory_space<vmem>>, vector<8x128xf32>
    tpu.vector_store %arg12[%c0_29, %c1024], %68 {strides = array<i32>} : memref<8x1536xf32, #tpu.memory_space<vmem>>, vector<8x128xf32>,
    %70 = vector.extract_strided_slice %42 {offsets = [9, 0, 0], sizes = [1, 8, 128], strides = [1, 1, 1]} : vector<12x8x128xf32> to vector<1x8x128xf32>
    %71 = vector.shape_cast %70 : vector<1x8x128xf32> to vector<8x128xf32>
    %c0_30 = arith.constant 0 : index
    %c1152 = arith.constant 1152 : index
    %72 = vector.load %arg12[%c0_30, %c1152] : memref<8x1536xf32, #tpu.memory_space<vmem>>, vector<8x128xf32>
    tpu.vector_store %arg12[%c0_30, %c1152], %71 {strides = array<i32>} : memref<8x1536xf32, #tpu.memory_space<vmem>>, vector<8x128xf32>,
    %73 = vector.extract_strided_slice %42 {offsets = [10, 0, 0], sizes = [1, 8, 128], strides = [1, 1, 1]} : vector<12x8x128xf32> to vector<1x8x128xf32>
    %74 = vector.shape_cast %73 : vector<1x8x128xf32> to vector<8x128xf32>
    %c0_31 = arith.constant 0 : index
    %c1280 = arith.constant 1280 : index
    %75 = vector.load %arg12[%c0_31, %c1280] : memref<8x1536xf32, #tpu.memory_space<vmem>>, vector<8x128xf32>
    tpu.vector_store %arg12[%c0_31, %c1280], %74 {strides = array<i32>} : memref<8x1536xf32, #tpu.memory_space<vmem>>, vector<8x128xf32>,
    %76 = vector.extract_strided_slice %42 {offsets = [11, 0, 0], sizes = [1, 8, 128], strides = [1, 1, 1]} : vector<12x8x128xf32> to vector<1x8x128xf32>
    %77 = vector.shape_cast %76 : vector<1x8x128xf32> to vector<8x128xf32>
    %c0_32 = arith.constant 0 : index
    %c1408 = arith.constant 1408 : index
    %78 = vector.load %arg12[%c0_32, %c1408] : memref<8x1536xf32, #tpu.memory_space<vmem>>, vector<8x128xf32>
    tpu.vector_store %arg12[%c0_32, %c1408], %77 {strides = array<i32>} : memref<8x1536xf32, #tpu.memory_space<vmem>>, vector<8x128xf32>,
    %c0_33 = arith.constant 0 : index
    %c0_34 = arith.constant 0 : index
    %79 = vector.load %arg12[%c0_33, %c0_34] : memref<8x1536xf32, #tpu.memory_space<vmem>>, vector<8x1536xf32>
    %80 = arith.truncf %79 : vector<8x1536xf32> to vector<8x1536xbf16>
    %c0_35 = arith.constant 0 : index
    %c0_36 = arith.constant 0 : index
    %81 = vector.load %arg9[%c0_35, %c0_36] : memref<1536x128xbf16, #tpu.memory_space<vmem>>, vector<1536x128xbf16>
    %cst_37 = arith.constant dense<0.000000e+00> : vector<8x128xf32>
    %82 = tpu.matmul %80, %81, %cst_37 {dimension_numbers = #tpu.dot_dimension_numbers<[1], [0], [0], [1], [0, 0, 1, 1], [], []>} : vector<8x1536xbf16>, vector<1536x128xbf16>, vector<8x128xf32> -> vector<8x128xf32>
    %c0_38 = arith.constant 0 : index
    %c0_39 = arith.constant 0 : index
    %83 = vector.load %arg10[%c0_38, %c0_39] : memref<1x128xf32, #tpu.memory_space<vmem>>, vector<1x128xf32>
    %84 = vector.broadcast %83 : vector<1x128xf32> to vector<8x128xf32>
    %85 = arith.addf %82, %84 : vector<8x128xf32>
    %c0_40 = arith.constant 0 : index
    %c0_41 = arith.constant 0 : index
    %86 = vector.load %arg11[%c0_40, %c0_41] : memref<8x128xf32, #tpu.memory_space<vmem>>, vector<8x128xf32>
    tpu.vector_store %arg11[%c0_40, %c0_41], %85 {strides = array<i32>} : memref<8x128xf32, #tpu.memory_space<vmem>>, vector<8x128xf32>,
    return
  }
  func.func @transform_0(%arg0: i32, %arg1: i32) -> (i32, i32, i32) {
    %c0_i32 = arith.constant 0 : i32
    %c0_i32_0 = arith.constant 0 : i32
    %c0_i32_1 = arith.constant 0 : i32
    return %c0_i32, %arg0, %c0_i32_0 : i32, i32, i32
  }
  func.func @transform_1(%arg0: i32, %arg1: i32) -> (i32, i32) {
    %c0_i32 = arith.constant 0 : i32
    %c0_i32_0 = arith.constant 0 : i32
    %c0_i32_1 = arith.constant 0 : i32
    return %c0_i32, %c0_i32_0 : i32, i32
  }
  func.func @transform_2(%arg0: i32, %arg1: i32) -> (i32, i32) {
    %c0_i32 = arith.constant 0 : i32
    %c0_i32_0 = arith.constant 0 : i32
    %c0_i32_1 = arith.constant 0 : i32
    return %c0_i32, %c0_i32_0 : i32, i32
  }
  func.func @transform_3(%arg0: i32, %arg1: i32) -> (i32, i32) {
    %c0_i32 = arith.constant 0 : i32
    %c0_i32_0 = arith.constant 0 : i32
    %c0_i32_1 = arith.constant 0 : i32
    return %c0_i32, %c0_i32_0 : i32, i32
  }
  func.func @transform_4(%arg0: i32, %arg1: i32) -> (i32, i32) {
    %c0_i32 = arith.constant 0 : i32
    %c0_i32_0 = arith.constant 0 : i32
    %c0_i32_1 = arith.constant 0 : i32
    return %c0_i32, %c0_i32_0 : i32, i32
  }
  func.func @transform_5(%arg0: i32, %arg1: i32) -> (i32, i32) {
    %c0_i32 = arith.constant 0 : i32
    %c0_i32_0 = arith.constant 0 : i32
    %c0_i32_1 = arith.constant 0 : i32
    return %c0_i32, %c0_i32_0 : i32, i32
  }
  func.func @transform_6(%arg0: i32, %arg1: i32) -> (i32, i32) {
    %c0_i32 = arith.constant 0 : i32
    %c0_i32_0 = arith.constant 0 : i32
    %c0_i32_1 = arith.constant 0 : i32
    return %c0_i32, %c0_i32_0 : i32, i32
  }
  func.func @transform_7(%arg0: i32, %arg1: i32) -> (i32, i32) {
    %c0_i32 = arith.constant 0 : i32
    %c0_i32_0 = arith.constant 0 : i32
    return %c0_i32, %arg1 : i32, i32
  }
  func.func @transform_8(%arg0: i32, %arg1: i32) -> (i32, i32) {
    %c0_i32 = arith.constant 0 : i32
    %c0_i32_0 = arith.constant 0 : i32
    return %c0_i32, %arg1 : i32, i32
  }
  func.func @transform_9(%arg0: i32, %arg1: i32) -> (i32, i32) {
    %c0_i32 = arith.constant 0 : i32
    return %arg0, %arg1 : i32, i32
  }
}

</mosaic_0001>

<llo_original>
// kernel: tpu_custom_call.1
$region0: #{tpu_custom_call.1}
  #allocation0 [shape = 'u32[]', space=smem, size = 0x4, offset = 0x4, fixed_abs, tag = 'smem constant byte address 0x4 - core index']
  #allocation1 [shape = 'u32[144,128]{1,0:T(1,128)}', space=vmem, size = 0x12000, scoped, tag = 'internal scratch']
  #allocation2 [shape = 'f32[8,1536]{1,0:T(8,128)}', space=vmem, size = 0xc000, scoped, tag = 'scratch operand']
  %s0 = inlined_call_operand.hbm [shape: f32[12,8,128], index: 0, kind: input, shape index: {}]
  %s1 = inlined_call_operand.hbm [shape: bf16[128,256], index: 1, kind: input, shape index: {}]
  %s2 = inlined_call_operand.vmem [shape: f32[1,128], index: 2, kind: input, shape index: {}]
  %s3 = inlined_call_operand.hbm [shape: bf16[128,256], index: 3, kind: input, shape index: {}]
  %s4 = inlined_call_operand.vmem [shape: f32[1,128], index: 4, kind: input, shape index: {}]
  %s5 = inlined_call_operand.hbm [shape: bf16[128,128], index: 5, kind: input, shape index: {}]
  %s6 = inlined_call_operand.vmem [shape: f32[1,128], index: 6, kind: input, shape index: {}]
  %s7 = inlined_call_operand.hbm [shape: bf16[1536,128], index: 7, kind: input, shape index: {}]
  %s8 = inlined_call_operand.vmem [shape: f32[1,128], index: 8, kind: input, shape index: {}]
  %s9 = inlined_call_operand.hbm [shape: f32[8,128], index: 9, kind: output, shape index: {}]
  %s10 = sld [smem:[#allocation0]]
  $region66: #{tpu_custom_call.1} parent=0
    _
  %s12 = ssub.s32 1, %s10
  %s13 = scalar_select 0, %s12, %s10
  $region1: #{tpu_custom_call.1} parent=0
    #allocation3 [shape = 'u8[49152]{0}', space=vmem, size = 0xc000, scoped, tag = 'input window, operand 0, single buffered']
    #allocation4 [shape = 's32[1]{0}', space=sflag, size = 0x4, scoped, tag = 'scoped memory for tpu_custom_call.1']
    #allocation5 [shape = 's32[1]{0}', space=sflag, size = 0x4, scoped, tag = 'scoped memory for tpu_custom_call.1']
    #allocation6 [shape = 'u8[65536]{0}', space=vmem, size = 0x10000, scoped, tag = 'input window, operand 1, single buffered']
    #allocation7 [shape = 's32[1]{0}', space=sflag, size = 0x4, scoped, tag = 'scoped memory for tpu_custom_call.1']
    #allocation8 [shape = 'u8[65536]{0}', space=vmem, size = 0x10000, scoped, tag = 'input window, operand 3, single buffered']
    #allocation9 [shape = 'u8[32768]{0}', space=vmem, size = 0x8000, scoped, tag = 'input window, operand 5, single buffered']
    #allocation10 [shape = 's32[1]{0}', space=sflag, size = 0x4, scoped, tag = 'scoped memory for tpu_custom_call.1']
    #allocation11 [shape = 'u8[393216]{0}', space=vmem, size = 0x60000, scoped, tag = 'input window, operand 7, single buffered']
    #allocation12 [shape = 'u8[4096]{0}', space=vmem, size = 0x1000, scoped, tag = 'output window, operand 0, single buffered']
    %14 = vsyncpa [#allocation4], 0
    %15 = vsyncpa [#allocation7], 0
    %16 = vsyncpa [#allocation10], 0
    %17 = vsyncpa [#allocation5], 0
    // Predicated region
    $region2: #{tpu_custom_call.1} parent=1 // pred_check
      _
    $region3: #{tpu_custom_call.1} parent=1 // pred_check_branch
      %19 = sbr.rel (0) target = $region5
    $region4: #{tpu_custom_call.1} parent=1 // pred_region
      %s21 = ssub.s32 1536, 1536
      %22 = vsyncadd [#allocation4], %s21
      %s23 = sshll.u32 [#allocation3], 4
      %s24 = int_to_ptr.vmem [resolvable:$true] %s23
      %29 = dma.hbm_to_vmem [thread:$0]  %s0, 1536, %s24, [#allocation4], 128, 128, 8
    $region5: #{tpu_custom_call.1} parent=1 // pred_fallthru
      _
    // Predicated region
    $region6: #{tpu_custom_call.1} parent=1 // pred_check
      _
    $region7: #{tpu_custom_call.1} parent=1 // pred_check_branch
      %31 = sbr.rel (0) target = $region9
    $region8: #{tpu_custom_call.1} parent=1 // pred_region
      %s33 = ssub.s32 2048, 2048
      %34 = vsyncadd [#allocation7], %s33
      %s35 = sshll.u32 [#allocation6], 4
      %s36 = int_to_ptr.vmem [resolvable:$true] %s35
      %41 = dma.hbm_to_vmem [thread:$0]  %s1, 2048, %s36, [#allocation7], 128, 128, 8
    $region9: #{tpu_custom_call.1} parent=1 // pred_fallthru
      _
    // Predicated region
    $region10: #{tpu_custom_call.1} parent=1 // pred_check
      _
    $region11: #{tpu_custom_call.1} parent=1 // pred_check_branch
      %43 = sbr.rel (0) target = $region13
    $region12: #{tpu_custom_call.1} parent=1 // pred_region
      _
    $region13: #{tpu_custom_call.1} parent=1 // pred_fallthru
      _
    // Predicated region
    $region14: #{tpu_custom_call.1} parent=1 // pred_check
      _
    $region15: #{tpu_custom_call.1} parent=1 // pred_check_branch
      %45 = sbr.rel (0) target = $region17
    $region16: #{tpu_custom_call.1} parent=1 // pred_region
      %s47 = ssub.s32 2048, 2048
      %48 = vsyncadd [#allocation7], %s47
      %s49 = sshll.u32 [#allocation8], 4
      %s50 = int_to_ptr.vmem [resolvable:$true] %s49
      %55 = dma.hbm_to_vmem [thread:$0]  %s3, 2048, %s50, [#allocation7], 128, 128, 8
    $region17: #{tpu_custom_call.1} parent=1 // pred_fallthru
      _
    // Predicated region
    $region18: #{tpu_custom_call.1} parent=1 // pred_check
      _
    $region19: #{tpu_custom_call.1} parent=1 // pred_check_branch
      %57 = sbr.rel (0) target = $region21
    $region20: #{tpu_custom_call.1} parent=1 // pred_region
      _
    $region21: #{tpu_custom_call.1} parent=1 // pred_fallthru
      _
    // Predicated region
    $region22: #{tpu_custom_call.1} parent=1 // pred_check
      _
    $region23: #{tpu_custom_call.1} parent=1 // pred_check_branch
      %59 = sbr.rel (0) target = $region25
    $region24: #{tpu_custom_call.1} parent=1 // pred_region
      %s61 = ssub.s32 1024, 1024
      %62 = vsyncadd [#allocation10], %s61
      %s63 = sshll.u32 [#allocation9], 4
      %s64 = int_to_ptr.vmem [resolvable:$true] %s63
      %69 = dma.hbm_to_vmem [thread:$0]  %s5, 1024, %s64, [#allocation10], 64, 64, 4
    $region25: #{tpu_custom_call.1} parent=1 // pred_fallthru
      _
    // Predicated region
    $region26: #{tpu_custom_call.1} parent=1 // pred_check
      _
    $region27: #{tpu_custom_call.1} parent=1 // pred_check_branch
      %71 = sbr.rel (0) target = $region29
    $region28: #{tpu_custom_call.1} parent=1 // pred_region
      _
    $region29: #{tpu_custom_call.1} parent=1 // pred_fallthru
      _
    // Predicated region
    $region30: #{tpu_custom_call.1} parent=1 // pred_check
      _
    $region31: #{tpu_custom_call.1} parent=1 // pred_check_branch
      %73 = sbr.rel (0) target = $region33
    $region32: #{tpu_custom_call.1} parent=1 // pred_region
      %s75 = ssub.s32 12288, 12288
      %76 = vsyncadd [#allocation10], %s75
      %s77 = sshll.u32 [#allocation11], 4
      %s78 = int_to_ptr.vmem [resolvable:$true] %s77
      %83 = dma.hbm_to_vmem [thread:$0]  %s7, 12288, %s78, [#allocation10], 64, 64, 4
    $region33: #{tpu_custom_call.1} parent=1 // pred_fallthru
      _
    // Predicated region
    $region34: #{tpu_custom_call.1} parent=1 // pred_check
      _
    $region35: #{tpu_custom_call.1} parent=1 // pred_check_branch
      %85 = sbr.rel (0) target = $region37
    $region36: #{tpu_custom_call.1} parent=1 // pred_region
      _
    $region37: #{tpu_custom_call.1} parent=1 // pred_fallthru
      _
    // Predicated region
    $region38: #{tpu_custom_call.1} parent=1 // pred_check
      _
    $region39: #{tpu_custom_call.1} parent=1 // pred_check_branch
      %87 = sbr.rel (0) target = $region41
    $region40: #{tpu_custom_call.1} parent=1 // pred_region
      %88 = dma.done [#allocation4], 1536
    $region41: #{tpu_custom_call.1} parent=1 // pred_fallthru
      _
    // Predicated region
    $region42: #{tpu_custom_call.1} parent=1 // pred_check
      _
    $region43: #{tpu_custom_call.1} parent=1 // pred_check_branch
      %90 = sbr.rel (0) target = $region45
    $region44: #{tpu_custom_call.1} parent=1 // pred_region
      %91 = dma.done [#allocation7], 2048
    $region45: #{tpu_custom_call.1} parent=1 // pred_fallthru
      _
    // Predicated region
    $region46: #{tpu_custom_call.1} parent=1 // pred_check
      _
    $region47: #{tpu_custom_call.1} parent=1 // pred_check_branch
      %93 = sbr.rel (0) target = $region49
    $region48: #{tpu_custom_call.1} parent=1 // pred_region
      %94 = dma.done [#allocation7], 2048
    $region49: #{tpu_custom_call.1} parent=1 // pred_fallthru
      _
    // Predicated region
    $region50: #{tpu_custom_call.1} parent=1 // pred_check
      _
    $region51: #{tpu_custom_call.1} parent=1 // pred_check_branch
      %96 = sbr.rel (0) target = $region53
    $region52: #{tpu_custom_call.1} parent=1 // pred_region
      %97 = dma.done [#allocation10], 1024
    $region53: #{tpu_custom_call.1} parent=1 // pred_fallthru
      _
    // Predicated region
    $region54: #{tpu_custom_call.1} parent=1 // pred_check
      _
    $region55: #{tpu_custom_call.1} parent=1 // pred_check_branch
      %99 = sbr.rel (0) target = $region57
    $region56: #{tpu_custom_call.1} parent=1 // pred_region
      %100 = dma.done [#allocation10], 12288
    $region57: #{tpu_custom_call.1} parent=1 // pred_fallthru
      _
    %v102 = vld [vmem:[#allocation3] sm:$0xff]
    %v103 = vld [vmem:[#allocation3 + $0x8] sm:$0xff]
    %v104 = vld [vmem:[#allocation3 + $0x10] sm:$0xff]
    %v105 = vld [vmem:[#allocation3 + $0x18] sm:$0xff]
    %v106 = vld [vmem:[#allocation3 + $0x20] sm:$0xff]
    %v107 = vld [vmem:[#allocation3 + $0x28] sm:$0xff]
    %v108 = vld [vmem:[#allocation3 + $0x30] sm:$0xff]
    %v109 = vld [vmem:[#allocation3 + $0x38] sm:$0xff]
    %v110 = vld [vmem:[#allocation3 + $0x40] sm:$0xff]
    %v111 = vld [vmem:[#allocation3 + $0x48] sm:$0xff]
    %v112 = vld [vmem:[#allocation3 + $0x50] sm:$0xff]
    %v113 = vld [vmem:[#allocation3 + $0x58] sm:$0xff]
    %v114 = vpack.c.bf16 %v103, %v102
    %v115 = vpack.c.bf16 %v105, %v104
    %v116 = vpack.c.bf16 %v107, %v106
    %v117 = vpack.c.bf16 %v109, %v108
    %v118 = vpack.c.bf16 %v111, %v110
    %v119 = vpack.c.bf16 %v113, %v112
    %v120 = vld [vmem:[#allocation6] sm:$0xff]
    %v121 = vld [vmem:[#allocation6 + $0x8] sm:$0xff]
    %v122 = vld [vmem:[#allocation6 + $0x10] sm:$0xff]
    %v123 = vld [vmem:[#allocation6 + $0x18] sm:$0xff]
    %v124 = vld [vmem:[#allocation6 + $0x20] sm:$0xff]
    %v125 = vld [vmem:[#allocation6 + $0x28] sm:$0xff]
    %v126 = vld [vmem:[#allocation6 + $0x30] sm:$0xff]
    %v127 = vld [vmem:[#allocation6 + $0x38] sm:$0xff]
    %v128 = vld [vmem:[#allocation6 + $0x40] sm:$0xff]
    %v129 = vld [vmem:[#allocation6 + $0x48] sm:$0xff]
    %v130 = vld [vmem:[#allocation6 + $0x50] sm:$0xff]
    %v131 = vld [vmem:[#allocation6 + $0x58] sm:$0xff]
    %v132 = vld [vmem:[#allocation6 + $0x60] sm:$0xff]
    %v133 = vld [vmem:[#allocation6 + $0x68] sm:$0xff]
    %v134 = vld [vmem:[#allocation6 + $0x70] sm:$0xff]
    %v135 = vld [vmem:[#allocation6 + $0x78] sm:$0xff]
    %v152 = vunpack.c.l.b16 %v120
    %v153 = vunpack.c.h.b16 %v120
    %v154 = vunpack.c.l.b16 %v121
    %v155 = vunpack.c.h.b16 %v121
    %v156 = vunpack.c.l.b16 %v122
    %v157 = vunpack.c.h.b16 %v122
    %v158 = vunpack.c.l.b16 %v123
    %v159 = vunpack.c.h.b16 %v123
    %v160 = vunpack.c.l.b16 %v124
    %v161 = vunpack.c.h.b16 %v124
    %v162 = vunpack.c.l.b16 %v125
    %v163 = vunpack.c.h.b16 %v125
    %v164 = vunpack.c.l.b16 %v126
    %v165 = vunpack.c.h.b16 %v126
    %v166 = vunpack.c.l.b16 %v127
    %v167 = vunpack.c.h.b16 %v127
    %v168 = vunpack.c.l.b16 %v128
    %v169 = vunpack.c.h.b16 %v128
    %v170 = vunpack.c.l.b16 %v129
    %v171 = vunpack.c.h.b16 %v129
    %v172 = vunpack.c.l.b16 %v130
    %v173 = vunpack.c.h.b16 %v130
    %v174 = vunpack.c.l.b16 %v131
    %v175 = vunpack.c.h.b16 %v131
    %v176 = vunpack.c.l.b16 %v132
    %v177 = vunpack.c.h.b16 %v132
    %v178 = vunpack.c.l.b16 %v133
    %v179 = vunpack.c.h.b16 %v133
    %v180 = vunpack.c.l.b16 %v134
    %v181 = vunpack.c.h.b16 %v134
    %v182 = vunpack.c.l.b16 %v135
    %v183 = vunpack.c.h.b16 %v135
    %v184 = vpack.c.b16 %v154, %v152
    %v185 = vpack.c.b16 %v155, %v153
    %v186 = vpack.c.b16 %v158, %v156
    %v187 = vpack.c.b16 %v159, %v157
    %v188 = vpack.c.b16 %v162, %v160
    %v189 = vpack.c.b16 %v163, %v161
    %v190 = vpack.c.b16 %v166, %v164
    %v191 = vpack.c.b16 %v167, %v165
    %v192 = vpack.c.b16 %v170, %v168
    %v193 = vpack.c.b16 %v171, %v169
    %v194 = vpack.c.b16 %v174, %v172
    %v195 = vpack.c.b16 %v175, %v173
    %v196 = vpack.c.b16 %v178, %v176
    %v197 = vpack.c.b16 %v179, %v177
    %v198 = vpack.c.b16 %v182, %v180
    %v199 = vpack.c.b16 %v183, %v181
    %216 = vmatprep.subr.bf16.mxu0 %v185
    %217 = vmatpush1.bf16.msra.mxu0 %v184
    %218 = vmatprep.subr.bf16.mxu0 %v187
    %219 = vmatpush1.bf16.msra.mxu0 %v186
    %220 = vmatprep.subr.bf16.mxu0 %v189
    %221 = vmatpush1.bf16.msra.mxu0 %v188
    %222 = vmatprep.subr.bf16.mxu0 %v191
    %223 = vmatpush1.bf16.msra.mxu0 %v190
    %224 = vmatprep.subr.bf16.mxu0 %v193
    %225 = vmatpush1.bf16.msra.mxu0 %v192
    %226 = vmatprep.subr.bf16.mxu0 %v195
    %227 = vmatpush1.bf16.msra.mxu0 %v194
    %228 = vmatprep.subr.bf16.mxu0 %v197
    %229 = vmatpush1.bf16.msra.mxu0 %v196
    %230 = vmatprep.subr.bf16.mxu0 %v199
    %231 = vmatpush1.bf16.msra.mxu0 %v198
    %232 = vmatprep.subr.bf16.mxu0 0
    %233 = vmatpush1.bf16.msra.mxu0 0
    %234 = vmatprep.subr.bf16.mxu0 0
    %235 = vmatpush1.bf16.msra.mxu0 0
    %236 = vmatprep.subr.bf16.mxu0 0
    %237 = vmatpush1.bf16.msra.mxu0 0
    %238 = vmatprep.subr.bf16.mxu0 0
    %239 = vmatpush1.bf16.msra.mxu0 0
    %240 = vmatprep.subr.bf16.mxu0 0
    %241 = vmatpush1.bf16.msra.mxu0 0
    %242 = vmatprep.subr.bf16.mxu0 0
    %243 = vmatpush1.bf16.msra.mxu0 0
    %244 = vmatprep.subr.bf16.mxu0 0
    %245 = vmatpush1.bf16.msra.mxu0 0
    %246 = vmatprep.subr.bf16.mxu0 0
    %247 = vmatpush1.bf16.msra.mxu0 0
    %248 = vmatprep.mubr.bf16.mxu0 0
    %249 = vmatmul.mubr.bf16.gmra.mrb[0].mxu0 %v114
    %v250 = vpop.f32.mrb[0].mxu0
    %v251 = vadd.f32 0.0, %v250
    %v252 = vpop.f32.mrb[0].mxu0
    %v253 = vpop.f32.mrb[0].mxu0
    %v254 = vadd.f32 0.0, %v253
    %v255 = vpop.f32.mrb[0].mxu0
    %v256 = vadd.f32 0.0, %v255
    %257 = vmatprep.mubr.bf16.mxu0 0
    %258 = vmatmul.mubr.bf16.gmra.mrb[0].mxu0 %v115
    %v259 = vpop.f32.mrb[0].mxu0
    %v260 = vadd.f32 0.0, %v259
    %v261 = vpop.f32.mrb[0].mxu0
    %v262 = vadd.f32 0.0, %v261
    %v263 = vpop.f32.mrb[0].mxu0
    %v264 = vadd.f32 0.0, %v263
    %v265 = vpop.f32.mrb[0].mxu0
    %v266 = vadd.f32 0.0, %v265
    %267 = vmatprep.mubr.bf16.mxu0 0
    %268 = vmatmul.mubr.bf16.gmra.mrb[0].mxu0 %v116
    %v269 = vpop.f32.mrb[0].mxu0
    %v270 = vadd.f32 0.0, %v269
    %v271 = vpop.f32.mrb[0].mxu0
    %v272 = vadd.f32 0.0, %v271
    %v273 = vpop.f32.mrb[0].mxu0
    %v274 = vadd.f32 0.0, %v273
    %v275 = vpop.f32.mrb[0].mxu0
    %v276 = vadd.f32 0.0, %v275
    %277 = vmatprep.mubr.bf16.mxu0 0
    %278 = vmatmul.mubr.bf16.gmra.mrb[0].mxu0 %v117
    %v279 = vpop.f32.mrb[0].mxu0
    %v280 = vadd.f32 0.0, %v279
    %v281 = vpop.f32.mrb[0].mxu0
    %v282 = vadd.f32 0.0, %v281
    %v283 = vpop.f32.mrb[0].mxu0
    %v284 = vadd.f32 0.0, %v283
    %v285 = vpop.f32.mrb[0].mxu0
    %v286 = vadd.f32 0.0, %v285
    %287 = vmatprep.mubr.bf16.mxu0 0
    %288 = vmatmul.mubr.bf16.gmra.mrb[0].mxu0 %v118
    %v289 = vpop.f32.mrb[0].mxu0
    %v290 = vadd.f32 0.0, %v289
    %v291 = vpop.f32.mrb[0].mxu0
    %v292 = vadd.f32 0.0, %v291
    %v293 = vpop.f32.mrb[0].mxu0
    %v294 = vadd.f32 0.0, %v293
    %v295 = vpop.f32.mrb[0].mxu0
    %v296 = vadd.f32 0.0, %v295
    %297 = vmatprep.mubr.bf16.mxu0 0
    %298 = vmatmul.mubr.bf16.gmra.mrb[0].mxu0 %v119
    %v299 = vpop.f32.mrb[0].mxu0
    %v300 = vadd.f32 0.0, %v299
    %v301 = vpop.f32.mrb[0].mxu0
    %v302 = vadd.f32 0.0, %v301
    %v303 = vpop.f32.mrb[0].mxu0
    %v304 = vadd.f32 0.0, %v303
    %v305 = vpop.f32.mrb[0].mxu0
    %v306 = vadd.f32 0.0, %v305
    %307 = vdwg.mxu0
    %v308 = vadd.f32 %v251, %v256
    %v309 = vadd.f32 %v254, %v262
    %v310 = vadd.f32 %v260, %v266
    %v311 = vadd.f32 %v264, %v272
    %v312 = vadd.f32 %v270, %v276
    %v313 = vadd.f32 %v274, %v282
    %v314 = vadd.f32 %v280, %v286
    %v315 = vadd.f32 %v284, %v292
    %v316 = vadd.f32 %v290, %v296
    %v317 = vadd.f32 %v294, %v302
    %v318 = vadd.f32 %v300, %v306
    %v319 = vadd.f32 %v304, 0.0
    %v320 = vld [vmem:[%s2] sm:$0x1]
    %v322 = vlaneseq
    %v323 = vshrl.u32 %v322, 7
    %v324 = vsub.s32 0, %v323
    %v325 = vrot.slane %v320, %v324
    %v327 = vadd.f32 %v308, %v325
    %v328 = vadd.f32 %v309, %v325
    %v329 = vadd.f32 %v310, %v325
    %v330 = vadd.f32 %v311, %v325
    %v331 = vadd.f32 %v312, %v325
    %v332 = vadd.f32 %v313, %v325
    %v333 = vadd.f32 %v314, %v325
    %v334 = vadd.f32 %v315, %v325
    %v335 = vadd.f32 %v316, %v325
    %v336 = vadd.f32 %v317, %v325
    %v337 = vadd.f32 %v318, %v325
    %v338 = vadd.f32 %v319, %v325
    %v339 = vmax.f32 %v327, 0.0
    %v340 = vmax.f32 %v328, 0.0
    %v341 = vmax.f32 %v329, 0.0
    %v342 = vmax.f32 %v330, 0.0
    %v343 = vmax.f32 %v331, 0.0
    %v344 = vmax.f32 %v332, 0.0
    %v345 = vmax.f32 %v333, 0.0
    %v346 = vmax.f32 %v334, 0.0
    %v347 = vmax.f32 %v335, 0.0
    %v348 = vmax.f32 %v336, 0.0
    %v349 = vmax.f32 %v337, 0.0
    %v350 = vmax.f32 %v338, 0.0
    %v351 = vpack.c.bf16 %v340, %v339
    %v352 = vpack.c.bf16 %v342, %v341
    %v353 = vpack.c.bf16 %v344, %v343
    %v354 = vpack.c.bf16 %v346, %v345
    %v355 = vpack.c.bf16 %v348, %v347
    %v356 = vpack.c.bf16 %v350, %v349
    %v357 = vld [vmem:[#allocation8] sm:$0xff]
    %v358 = vld [vmem:[#allocation8 + $0x8] sm:$0xff]
    %v359 = vld [vmem:[#allocation8 + $0x10] sm:$0xff]
    %v360 = vld [vmem:[#allocation8 + $0x18] sm:$0xff]
    %v361 = vld [vmem:[#allocation8 + $0x20] sm:$0xff]
    %v362 = vld [vmem:[#allocation8 + $0x28] sm:$0xff]
    %v363 = vld [vmem:[#allocation8 + $0x30] sm:$0xff]
    %v364 = vld [vmem:[#allocation8 + $0x38] sm:$0xff]
    %v365 = vld [vmem:[#allocation8 + $0x40] sm:$0xff]
    %v366 = vld [vmem:[#allocation8 + $0x48] sm:$0xff]
    %v367 = vld [vmem:[#allocation8 + $0x50] sm:$0xff]
    %v368 = vld [vmem:[#allocation8 + $0x58] sm:$0xff]
    %v369 = vld [vmem:[#allocation8 + $0x60] sm:$0xff]
    %v370 = vld [vmem:[#allocation8 + $0x68] sm:$0xff]
    %v371 = vld [vmem:[#allocation8 + $0x70] sm:$0xff]
    %v372 = vld [vmem:[#allocation8 + $0x78] sm:$0xff]
    %v389 = vunpack.c.l.b16 %v357
    %v390 = vunpack.c.h.b16 %v357
    %v391 = vunpack.c.l.b16 %v358
    %v392 = vunpack.c.h.b16 %v358
    %v393 = vunpack.c.l.b16 %v359
    %v394 = vunpack.c.h.b16 %v359
    %v395 = vunpack.c.l.b16 %v360
    %v396 = vunpack.c.h.b16 %v360
    %v397 = vunpack.c.l.b16 %v361
    %v398 = vunpack.c.h.b16 %v361
    %v399 = vunpack.c.l.b16 %v362
    %v400 = vunpack.c.h.b16 %v362
    %v401 = vunpack.c.l.b16 %v363
    %v402 = vunpack.c.h.b16 %v363
    %v403 = vunpack.c.l.b16 %v364
    %v404 = vunpack.c.h.b16 %v364
    %v405 = vunpack.c.l.b16 %v365
    %v406 = vunpack.c.h.b16 %v365
    %v407 = vunpack.c.l.b16 %v366
    %v408 = vunpack.c.h.b16 %v366
    %v409 = vunpack.c.l.b16 %v367
    %v410 = vunpack.c.h.b16 %v367
    %v411 = vunpack.c.l.b16 %v368
    %v412 = vunpack.c.h.b16 %v368
    %v413 = vunpack.c.l.b16 %v369
    %v414 = vunpack.c.h.b16 %v369
    %v415 = vunpack.c.l.b16 %v370
    %v416 = vunpack.c.h.b16 %v370
    %v417 = vunpack.c.l.b16 %v371
    %v418 = vunpack.c.h.b16 %v371
    %v419 = vunpack.c.l.b16 %v372
    %v420 = vunpack.c.h.b16 %v372
    %v421 = vpack.c.b16 %v391, %v389
    %v422 = vpack.c.b16 %v392, %v390
    %v423 = vpack.c.b16 %v395, %v393
    %v424 = vpack.c.b16 %v396, %v394
    %v425 = vpack.c.b16 %v399, %v397
    %v426 = vpack.c.b16 %v400, %v398
    %v427 = vpack.c.b16 %v403, %v401
    %v428 = vpack.c.b16 %v404, %v402
    %v429 = vpack.c.b16 %v407, %v405
    %v430 = vpack.c.b16 %v408, %v406
    %v431 = vpack.c.b16 %v411, %v409
    %v432 = vpack.c.b16 %v412, %v410
    %v433 = vpack.c.b16 %v415, %v413
    %v434 = vpack.c.b16 %v416, %v414
    %v435 = vpack.c.b16 %v419, %v417
    %v436 = vpack.c.b16 %v420, %v418
    %453 = vmatprep.subr.bf16.mxu0 %v422
    %454 = vmatpush1.bf16.msra.mxu0 %v421
    %455 = vmatprep.subr.bf16.mxu0 %v424
    %456 = vmatpush1.bf16.msra.mxu0 %v423
    %457 = vmatprep.subr.bf16.mxu0 %v426
    %458 = vmatpush1.bf16.msra.mxu0 %v425
    %459 = vmatprep.subr.bf16.mxu0 %v428
    %460 = vmatpush1.bf16.msra.mxu0 %v427
    %461 = vmatprep.subr.bf16.mxu0 %v430
    %462 = vmatpush1.bf16.msra.mxu0 %v429
    %463 = vmatprep.subr.bf16.mxu0 %v432
    %464 = vmatpush1.bf16.msra.mxu0 %v431
    %465 = vmatprep.subr.bf16.mxu0 %v434
    %466 = vmatpush1.bf16.msra.mxu0 %v433
    %467 = vmatprep.subr.bf16.mxu0 %v436
    %468 = vmatpush1.bf16.msra.mxu0 %v435
    %469 = vmatprep.subr.bf16.mxu0 0
    %470 = vmatpush1.bf16.msra.mxu0 0
    %471 = vmatprep.subr.bf16.mxu0 0
    %472 = vmatpush1.bf16.msra.mxu0 0
    %473 = vmatprep.subr.bf16.mxu0 0
    %474 = vmatpush1.bf16.msra.mxu0 0
    %475 = vmatprep.subr.bf16.mxu0 0
    %476 = vmatpush1.bf16.msra.mxu0 0
    %477 = vmatprep.subr.bf16.mxu0 0
    %478 = vmatpush1.bf16.msra.mxu0 0
    %479 = vmatprep.subr.bf16.mxu0 0
    %480 = vmatpush1.bf16.msra.mxu0 0
    %481 = vmatprep.subr.bf16.mxu0 0
    %482 = vmatpush1.bf16.msra.mxu0 0
    %483 = vmatprep.subr.bf16.mxu0 0
    %484 = vmatpush1.bf16.msra.mxu0 0
    %485 = vmatprep.mubr.bf16.mxu0 0
    %486 = vmatmul.mubr.bf16.gmra.mrb[0].mxu0 %v351
    %v487 = vpop.f32.mrb[0].mxu0
    %v488 = vadd.f32 0.0, %v487
    %v489 = vpop.f32.mrb[0].mxu0
    %v490 = vpop.f32.mrb[0].mxu0
    %v491 = vadd.f32 0.0, %v490
    %v492 = vpop.f32.mrb[0].mxu0
    %v493 = vadd.f32 0.0, %v492
    %494 = vmatprep.mubr.bf16.mxu0 0
    %495 = vmatmul.mubr.bf16.gmra.mrb[0].mxu0 %v352
    %v496 = vpop.f32.mrb[0].mxu0
    %v497 = vadd.f32 0.0, %v496
    %v498 = vpop.f32.mrb[0].mxu0
    %v499 = vadd.f32 0.0, %v498
    %v500 = vpop.f32.mrb[0].mxu0
    %v501 = vadd.f32 0.0, %v500
    %v502 = vpop.f32.mrb[0].mxu0
    %v503 = vadd.f32 0.0, %v502
    %504 = vmatprep.mubr.bf16.mxu0 0
    %505 = vmatmul.mubr.bf16.gmra.mrb[0].mxu0 %v353
    %v506 = vpop.f32.mrb[0].mxu0
    %v507 = vadd.f32 0.0, %v506
    %v508 = vpop.f32.mrb[0].mxu0
    %v509 = vadd.f32 0.0, %v508
    %v510 = vpop.f32.mrb[0].mxu0
    %v511 = vadd.f32 0.0, %v510
    %v512 = vpop.f32.mrb[0].mxu0
    %v513 = vadd.f32 0.0, %v512
    %514 = vmatprep.mubr.bf16.mxu0 0
    %515 = vmatmul.mubr.bf16.gmra.mrb[0].mxu0 %v354
    %v516 = vpop.f32.mrb[0].mxu0
    %v517 = vadd.f32 0.0, %v516
    %v518 = vpop.f32.mrb[0].mxu0
    %v519 = vadd.f32 0.0, %v518
    %v520 = vpop.f32.mrb[0].mxu0
    %v521 = vadd.f32 0.0, %v520
    %v522 = vpop.f32.mrb[0].mxu0
    %v523 = vadd.f32 0.0, %v522
    %524 = vmatprep.mubr.bf16.mxu0 0
    %525 = vmatmul.mubr.bf16.gmra.mrb[0].mxu0 %v355
    %v526 = vpop.f32.mrb[0].mxu0
    %v527 = vadd.f32 0.0, %v526
    %v528 = vpop.f32.mrb[0].mxu0
    %v529 = vadd.f32 0.0, %v528
    %v530 = vpop.f32.mrb[0].mxu0
    %v531 = vadd.f32 0.0, %v530
    %v532 = vpop.f32.mrb[0].mxu0
    %v533 = vadd.f32 0.0, %v532
    %534 = vmatprep.mubr.bf16.mxu0 0
    %535 = vmatmul.mubr.bf16.gmra.mrb[0].mxu0 %v356
    %v536 = vpop.f32.mrb[0].mxu0
    %v537 = vadd.f32 0.0, %v536
    %v538 = vpop.f32.mrb[0].mxu0
    %v539 = vadd.f32 0.0, %v538
    %v540 = vpop.f32.mrb[0].mxu0
    %v541 = vadd.f32 0.0, %v540
    %v542 = vpop.f32.mrb[0].mxu0
    %v543 = vadd.f32 0.0, %v542
    %544 = vdwg.mxu0
    %v545 = vadd.f32 %v488, %v493
    %v546 = vadd.f32 %v491, %v499
    %v547 = vadd.f32 %v497, %v503
    %v548 = vadd.f32 %v501, %v509
    %v549 = vadd.f32 %v507, %v513
    %v550 = vadd.f32 %v511, %v519
    %v551 = vadd.f32 %v517, %v523
    %v552 = vadd.f32 %v521, %v529
    %v553 = vadd.f32 %v527, %v533
    %v554 = vadd.f32 %v531, %v539
    %v555 = vadd.f32 %v537, %v543
    %v556 = vadd.f32 %v541, 0.0
    %v557 = vld [vmem:[%s4] sm:$0x1]
    %v559 = vlaneseq
    %v560 = vshrl.u32 %v559, 7
    %v561 = vsub.s32 0, %v560
    %v562 = vrot.slane %v557, %v561
    %v564 = vadd.f32 %v545, %v562
    %v565 = vadd.f32 %v546, %v562
    %v566 = vadd.f32 %v547, %v562
    %v567 = vadd.f32 %v548, %v562
    %v568 = vadd.f32 %v549, %v562
    %v569 = vadd.f32 %v550, %v562
    %v570 = vadd.f32 %v551, %v562
    %v571 = vadd.f32 %v552, %v562
    %v572 = vadd.f32 %v553, %v562
    %v573 = vadd.f32 %v554, %v562
    %v574 = vadd.f32 %v555, %v562
    %v575 = vadd.f32 %v556, %v562
    %v576 = vmax.f32 %v564, 0.0
    %v577 = vmax.f32 %v565, 0.0
    %v578 = vmax.f32 %v566, 0.0
    %v579 = vmax.f32 %v567, 0.0
    %v580 = vmax.f32 %v568, 0.0
    %v581 = vmax.f32 %v569, 0.0
    %v582 = vmax.f32 %v570, 0.0
    %v583 = vmax.f32 %v571, 0.0
    %v584 = vmax.f32 %v572, 0.0
    %v585 = vmax.f32 %v573, 0.0
    %v586 = vmax.f32 %v574, 0.0
    %v587 = vmax.f32 %v575, 0.0
    %v588 = vpack.c.bf16 %v577, %v576
    %v589 = vpack.c.bf16 %v579, %v578
    %v590 = vpack.c.bf16 %v581, %v580
    %v591 = vpack.c.bf16 %v583, %v582
    %v592 = vpack.c.bf16 %v585, %v584
    %v593 = vpack.c.bf16 %v587, %v586
    %v594 = vld [vmem:[#allocation9] sm:$0xf]
    %v595 = vld [vmem:[#allocation9 + $0x4] sm:$0xf]
    %v596 = vld [vmem:[#allocation9 + $0x8] sm:$0xf]
    %v597 = vld [vmem:[#allocation9 + $0xc] sm:$0xf]
    %v598 = vld [vmem:[#allocation9 + $0x10] sm:$0xf]
    %v599 = vld [vmem:[#allocation9 + $0x14] sm:$0xf]
    %v600 = vld [vmem:[#allocation9 + $0x18] sm:$0xf]
    %v601 = vld [vmem:[#allocation9 + $0x1c] sm:$0xf]
    %v602 = vld [vmem:[#allocation9 + $0x20] sm:$0xf]
    %v603 = vld [vmem:[#allocation9 + $0x24] sm:$0xf]
    %v604 = vld [vmem:[#allocation9 + $0x28] sm:$0xf]
    %v605 = vld [vmem:[#allocation9 + $0x2c] sm:$0xf]
    %v606 = vld [vmem:[#allocation9 + $0x30] sm:$0xf]
    %v607 = vld [vmem:[#allocation9 + $0x34] sm:$0xf]
    %v608 = vld [vmem:[#allocation9 + $0x38] sm:$0xf]
    %v609 = vld [vmem:[#allocation9 + $0x3c] sm:$0xf]
    %v626 = vunpack.c.l.b16 %v594
    %v627 = vunpack.c.l.b16 %v595
    %v628 = vunpack.c.l.b16 %v596
    %v629 = vunpack.c.l.b16 %v597
    %v630 = vunpack.c.l.b16 %v598
    %v631 = vunpack.c.l.b16 %v599
    %v632 = vunpack.c.l.b16 %v600
    %v633 = vunpack.c.l.b16 %v601
    %v634 = vunpack.c.l.b16 %v602
    %v635 = vunpack.c.l.b16 %v603
    %v636 = vunpack.c.l.b16 %v604
    %v637 = vunpack.c.l.b16 %v605
    %v638 = vunpack.c.l.b16 %v606
    %v639 = vunpack.c.l.b16 %v607
    %v640 = vunpack.c.l.b16 %v608
    %v641 = vunpack.c.l.b16 %v609
    %v642 = vpack.c.b16 %v627, %v626
    %v643 = vpack.c.b16 %v629, %v628
    %v644 = vpack.c.b16 %v631, %v630
    %v645 = vpack.c.b16 %v633, %v632
    %v646 = vpack.c.b16 %v635, %v634
    %v647 = vpack.c.b16 %v637, %v636
    %v648 = vpack.c.b16 %v639, %v638
    %v649 = vpack.c.b16 %v641, %v640
    %658 = vmatprep.subr.bf16.mxu0 0
    %659 = vmatpush1.bf16.msra.mxu0 %v642
    %660 = vmatprep.subr.bf16.mxu0 0
    %661 = vmatpush1.bf16.msra.mxu0 %v643
    %662 = vmatprep.subr.bf16.mxu0 0
    %663 = vmatpush1.bf16.msra.mxu0 %v644
    %664 = vmatprep.subr.bf16.mxu0 0
    %665 = vmatpush1.bf16.msra.mxu0 %v645
    %666 = vmatprep.subr.bf16.mxu0 0
    %667 = vmatpush1.bf16.msra.mxu0 %v646
    %668 = vmatprep.subr.bf16.mxu0 0
    %669 = vmatpush1.bf16.msra.mxu0 %v647
    %670 = vmatprep.subr.bf16.mxu0 0
    %671 = vmatpush1.bf16.msra.mxu0 %v648
    %672 = vmatprep.subr.bf16.mxu0 0
    %673 = vmatpush1.bf16.msra.mxu0 %v649
    %674 = vmatprep.subr.bf16.mxu0 0
    %675 = vmatpush1.bf16.msra.mxu0 0
    %676 = vmatprep.subr.bf16.mxu0 0
    %677 = vmatpush1.bf16.msra.mxu0 0
    %678 = vmatprep.subr.bf16.mxu0 0
    %679 = vmatpush1.bf16.msra.mxu0 0
    %680 = vmatprep.subr.bf16.mxu0 0
    %681 = vmatpush1.bf16.msra.mxu0 0
    %682 = vmatprep.subr.bf16.mxu0 0
    %683 = vmatpush1.bf16.msra.mxu0 0
    %684 = vmatprep.subr.bf16.mxu0 0
    %685 = vmatpush1.bf16.msra.mxu0 0
    %686 = vmatprep.subr.bf16.mxu0 0
    %687 = vmatpush1.bf16.msra.mxu0 0
    %688 = vmatprep.subr.bf16.mxu0 0
    %689 = vmatpush1.bf16.msra.mxu0 0
    %690 = vmatprep.mubr.bf16.mxu0 0
    %691 = vmatmul.mubr.bf16.gmra.mrb[0].mxu0 %v588
    %v692 = vpop.f32.mrb[0].mxu0
    %v693 = vadd.f32 0.0, %v692
    %v694 = vpop.f32.mrb[0].mxu0
    %v695 = vpop.f32.mrb[0].mxu0
    %v696 = vadd.f32 0.0, %v695
    %v697 = vpop.f32.mrb[0].mxu0
    %698 = vmatprep.mubr.bf16.mxu0 0
    %699 = vmatmul.mubr.bf16.gmra.mrb[0].mxu0 %v589
    %v700 = vpop.f32.mrb[0].mxu0
    %v701 = vadd.f32 0.0, %v700
    %v702 = vpop.f32.mrb[0].mxu0
    %v703 = vpop.f32.mrb[0].mxu0
    %v704 = vadd.f32 0.0, %v703
    %v705 = vpop.f32.mrb[0].mxu0
    %706 = vmatprep.mubr.bf16.mxu0 0
    %707 = vmatmul.mubr.bf16.gmra.mrb[0].mxu0 %v590
    %v708 = vpop.f32.mrb[0].mxu0
    %v709 = vadd.f32 0.0, %v708
    %v710 = vpop.f32.mrb[0].mxu0
    %v711 = vpop.f32.mrb[0].mxu0
    %v712 = vadd.f32 0.0, %v711
    %v713 = vpop.f32.mrb[0].mxu0
    %714 = vmatprep.mubr.bf16.mxu0 0
    %715 = vmatmul.mubr.bf16.gmra.mrb[0].mxu0 %v591
    %v716 = vpop.f32.mrb[0].mxu0
    %v717 = vadd.f32 0.0, %v716
    %v718 = vpop.f32.mrb[0].mxu0
    %v719 = vpop.f32.mrb[0].mxu0
    %v720 = vadd.f32 0.0, %v719
    %v721 = vpop.f32.mrb[0].mxu0
    %722 = vmatprep.mubr.bf16.mxu0 0
    %723 = vmatmul.mubr.bf16.gmra.mrb[0].mxu0 %v592
    %v724 = vpop.f32.mrb[0].mxu0
    %v725 = vadd.f32 0.0, %v724
    %v726 = vpop.f32.mrb[0].mxu0
    %v727 = vpop.f32.mrb[0].mxu0
    %v728 = vadd.f32 0.0, %v727
    %v729 = vpop.f32.mrb[0].mxu0
    %730 = vmatprep.mubr.bf16.mxu0 0
    %731 = vmatmul.mubr.bf16.gmra.mrb[0].mxu0 %v593
    %v732 = vpop.f32.mrb[0].mxu0
    %v733 = vadd.f32 0.0, %v732
    %v734 = vpop.f32.mrb[0].mxu0
    %v735 = vpop.f32.mrb[0].mxu0
    %v736 = vadd.f32 0.0, %v735
    %v737 = vpop.f32.mrb[0].mxu0
    %738 = vdwg.mxu0
    %v739 = vld [vmem:[%s6] sm:$0x1]
    %v741 = vlaneseq
    %v742 = vshrl.u32 %v741, 7
    %v743 = vsub.s32 0, %v742
    %v744 = vrot.slane %v739, %v743
    %v746 = vadd.f32 %v693, %v744
    %v747 = vadd.f32 %v696, %v744
    %v748 = vadd.f32 %v701, %v744
    %v749 = vadd.f32 %v704, %v744
    %v750 = vadd.f32 %v709, %v744
    %v751 = vadd.f32 %v712, %v744
    %v752 = vadd.f32 %v717, %v744
    %v753 = vadd.f32 %v720, %v744
    %v754 = vadd.f32 %v725, %v744
    %v755 = vadd.f32 %v728, %v744
    %v756 = vadd.f32 %v733, %v744
    %v757 = vadd.f32 %v736, %v744
    %v758 = vmax.f32 %v746, 0.0
    %v759 = vmax.f32 %v747, 0.0
    %v760 = vmax.f32 %v748, 0.0
    %v761 = vmax.f32 %v749, 0.0
    %v762 = vmax.f32 %v750, 0.0
    %v763 = vmax.f32 %v751, 0.0
    %v764 = vmax.f32 %v752, 0.0
    %v765 = vmax.f32 %v753, 0.0
    %v766 = vmax.f32 %v754, 0.0
    %v767 = vmax.f32 %v755, 0.0
    %v768 = vmax.f32 %v756, 0.0
    %v769 = vmax.f32 %v757, 0.0
    %770 = vst [vmem:[#allocation2] sm:$0xff] %v758
    %771 = vst [vmem:[#allocation2 + $0x8] sm:$0xff] %v759
    %772 = vst [vmem:[#allocation2 + $0x10] sm:$0xff] %v760
    %773 = vst [vmem:[#allocation2 + $0x18] sm:$0xff] %v761
    %774 = vst [vmem:[#allocation2 + $0x20] sm:$0xff] %v762
    %775 = vst [vmem:[#allocation2 + $0x28] sm:$0xff] %v763
    %776 = vst [vmem:[#allocation2 + $0x30] sm:$0xff] %v764
    %777 = vst [vmem:[#allocation2 + $0x38] sm:$0xff] %v765
    %778 = vst [vmem:[#allocation2 + $0x40] sm:$0xff] %v766
    %779 = vst [vmem:[#allocation2 + $0x48] sm:$0xff] %v767
    %780 = vst [vmem:[#allocation2 + $0x50] sm:$0xff] %v768
    %781 = vst [vmem:[#allocation2 + $0x58] sm:$0xff] %v769
    %v782 = vld [vmem:[#allocation2] sm:$0xff]
    %v783 = vld [vmem:[#allocation2 + $0x8] sm:$0xff]
    %v784 = vld [vmem:[#allocation2 + $0x10] sm:$0xff]
    %v785 = vld [vmem:[#allocation2 + $0x18] sm:$0xff]
    %v786 = vld [vmem:[#allocation2 + $0x20] sm:$0xff]
    %v787 = vld [vmem:[#allocation2 + $0x28] sm:$0xff]
    %v788 = vld [vmem:[#allocation2 + $0x30] sm:$0xff]
    %v789 = vld [vmem:[#allocation2 + $0x38] sm:$0xff]
    %v790 = vld [vmem:[#allocation2 + $0x40] sm:$0xff]
    %v791 = vld [vmem:[#allocation2 + $0x48] sm:$0xff]
    %v792 = vld [vmem:[#allocation2 + $0x50] sm:$0xff]
    %v793 = vld [vmem:[#allocation2 + $0x58] sm:$0xff]
    %v794 = vpack.c.bf16 %v782, %v782
    %v795 = vpack.c.bf16 %v783, %v783
    %v796 = vpack.c.bf16 %v784, %v784
    %v797 = vpack.c.bf16 %v785, %v785
    %v798 = vpack.c.bf16 %v786, %v786
    %v799 = vpack.c.bf16 %v787, %v787
    %v800 = vpack.c.bf16 %v788, %v788
    %v801 = vpack.c.bf16 %v789, %v789
    %v802 = vpack.c.bf16 %v790, %v790
    %v803 = vpack.c.bf16 %v791, %v791
    %v804 = vpack.c.bf16 %v792, %v792
    %v805 = vpack.c.bf16 %v793, %v793
    %v806 = vld [vmem:[#allocation11] sm:$0xf]
    %v807 = vld [vmem:[#allocation11 + $0x4] sm:$0xf]
    %v808 = vld [vmem:[#allocation11 + $0x8] sm:$0xf]
    %v809 = vld [vmem:[#allocation11 + $0xc] sm:$0xf]
    %v810 = vld [vmem:[#allocation11 + $0x10] sm:$0xf]
    %v811 = vld [vmem:[#allocation11 + $0x14] sm:$0xf]
    %v812 = vld [vmem:[#allocation11 + $0x18] sm:$0xf]
    %v813 = vld [vmem:[#allocation11 + $0x1c] sm:$0xf]
    %v814 = vld [vmem:[#allocation11 + $0x20] sm:$0xf]
    %v815 = vld [vmem:[#allocation11 + $0x24] sm:$0xf]
    %v816 = vld [vmem:[#allocation11 + $0x28] sm:$0xf]
    %v817 = vld [vmem:[#allocation11 + $0x2c] sm:$0xf]
    %v818 = vld [vmem:[#allocation11 + $0x30] sm:$0xf]
    %v819 = vld [vmem:[#allocation11 + $0x34] sm:$0xf]
    %v820 = vld [vmem:[#allocation11 + $0x38] sm:$0xf]
    %v821 = vld [vmem:[#allocation11 + $0x3c] sm:$0xf]
    %v822 = vld [vmem:[#allocation11 + $0x40] sm:$0xf]
    %v823 = vld [vmem:[#allocation11 + $0x44] sm:$0xf]
    %v824 = vld [vmem:[#allocation11 + $0x48] sm:$0xf]
    %v825 = vld [vmem:[#allocation11 + $0x4c] sm:$0xf]
    %v826 = vld [vmem:[#allocation11 + $0x50] sm:$0xf]
    %v827 = vld [vmem:[#allocation11 + $0x54] sm:$0xf]
    %v828 = vld [vmem:[#allocation11 + $0x58] sm:$0xf]
    %v829 = vld [vmem:[#allocation11 + $0x5c] sm:$0xf]
    %v830 = vld [vmem:[#allocation11 + $0x60] sm:$0xf]
    %v831 = vld [vmem:[#allocation11 + $0x64] sm:$0xf]
    %v832 = vld [vmem:[#allocation11 + $0x68] sm:$0xf]
    %v833 = vld [vmem:[#allocation11 + $0x6c] sm:$0xf]
    %v834 = vld [vmem:[#allocation11 + $0x70] sm:$0xf]
    %v835 = vld [vmem:[#allocation11 + $0x74] sm:$0xf]
    %v836 = vld [vmem:[#allocation11 + $0x78] sm:$0xf]
    %v837 = vld [vmem:[#allocation11 + $0x7c] sm:$0xf]
    %v838 = vld [vmem:[#allocation11 + $0x80] sm:$0xf]
    %v839 = vld [vmem:[#allocation11 + $0x84] sm:$0xf]
    %v840 = vld [vmem:[#allocation11 + $0x88] sm:$0xf]
    %v841 = vld [vmem:[#allocation11 + $0x8c] sm:$0xf]
    %v842 = vld [vmem:[#allocation11 + $0x90] sm:$0xf]
    %v843 = vld [vmem:[#allocation11 + $0x94] sm:$0xf]
    %v844 = vld [vmem:[#allocation11 + $0x98] sm:$0xf]
    %v845 = vld [vmem:[#allocation11 + $0x9c] sm:$0xf]
    %v846 = vld [vmem:[#allocation11 + $0xa0] sm:$0xf]
    %v847 = vld [vmem:[#allocation11 + $0xa4] sm:$0xf]
    %v848 = vld [vmem:[#allocation11 + $0xa8] sm:$0xf]
    %v849 = vld [vmem:[#allocation11 + $0xac] sm:$0xf]
    %v850 = vld [vmem:[#allocation11 + $0xb0] sm:$0xf]
    %v851 = vld [vmem:[#allocation11 + $0xb4] sm:$0xf]
    %v852 = vld [vmem:[#allocation11 + $0xb8] sm:$0xf]
    %v853 = vld [vmem:[#allocation11 + $0xbc] sm:$0xf]
    %v854 = vld [vmem:[#allocation11 + $0xc0] sm:$0xf]
    %v855 = vld [vmem:[#allocation11 + $0xc4] sm:$0xf]
    %v856 = vld [vmem:[#allocation11 + $0xc8] sm:$0xf]
    %v857 = vld [vmem:[#allocation11 + $0xcc] sm:$0xf]
    %v858 = vld [vmem:[#allocation11 + $0xd0] sm:$0xf]
    %v859 = vld [vmem:[#allocation11 + $0xd4] sm:$0xf]
    %v860 = vld [vmem:[#allocation11 + $0xd8] sm:$0xf]
    %v861 = vld [vmem:[#allocation11 + $0xdc] sm:$0xf]
    %v862 = vld [vmem:[#allocation11 + $0xe0] sm:$0xf]
    %v863 = vld [vmem:[#allocation11 + $0xe4] sm:$0xf]
    %v864 = vld [vmem:[#allocation11 + $0xe8] sm:$0xf]
    %v865 = vld [vmem:[#allocation11 + $0xec] sm:$0xf]
    %v866 = vld [vmem:[#allocation11 + $0xf0] sm:$0xf]
    %v867 = vld [vmem:[#allocation11 + $0xf4] sm:$0xf]
    %v868 = vld [vmem:[#allocation11 + $0xf8] sm:$0xf]
    %v869 = vld [vmem:[#allocation11 + $0xfc] sm:$0xf]
    %v870 = vld [vmem:[#allocation11 + $0x100] sm:$0xf]
    %v871 = vld [vmem:[#allocation11 + $0x104] sm:$0xf]
    %v872 = vld [vmem:[#allocation11 + $0x108] sm:$0xf]
    %v873 = vld [vmem:[#allocation11 + $0x10c] sm:$0xf]
    %v874 = vld [vmem:[#allocation11 + $0x110] sm:$0xf]
    %v875 = vld [vmem:[#allocation11 + $0x114] sm:$0xf]
    %v876 = vld [vmem:[#allocation11 + $0x118] sm:$0xf]
    %v877 = vld [vmem:[#allocation11 + $0x11c] sm:$0xf]
    %v878 = vld [vmem:[#allocation11 + $0x120] sm:$0xf]
    %v879 = vld [vmem:[#allocation11 + $0x124] sm:$0xf]
    %v880 = vld [vmem:[#allocation11 + $0x128] sm:$0xf]
    %v881 = vld [vmem:[#allocation11 + $0x12c] sm:$0xf]
    %v882 = vld [vmem:[#allocation11 + $0x130] sm:$0xf]
    %v883 = vld [vmem:[#allocation11 + $0x134] sm:$0xf]
    %v884 = vld [vmem:[#allocation11 + $0x138] sm:$0xf]
    %v885 = vld [vmem:[#allocation11 + $0x13c] sm:$0xf]
    %v886 = vld [vmem:[#allocation11 + $0x140] sm:$0xf]
    %v887 = vld [vmem:[#allocation11 + $0x144] sm:$0xf]
    %v888 = vld [vmem:[#allocation11 + $0x148] sm:$0xf]
    %v889 = vld [vmem:[#allocation11 + $0x14c] sm:$0xf]
    %v890 = vld [vmem:[#allocation11 + $0x150] sm:$0xf]
    %v891 = vld [vmem:[#allocation11 + $0x154] sm:$0xf]
    %v892 = vld [vmem:[#allocation11 + $0x158] sm:$0xf]
    %v893 = vld [vmem:[#allocation11 + $0x15c] sm:$0xf]
    %v894 = vld [vmem:[#allocation11 + $0x160] sm:$0xf]
    %v895 = vld [vmem:[#allocation11 + $0x164] sm:$0xf]
    %v896 = vld [vmem:[#allocation11 + $0x168] sm:$0xf]
    %v897 = vld [vmem:[#allocation11 + $0x16c] sm:$0xf]
    %v898 = vld [vmem:[#allocation11 + $0x170] sm:$0xf]
    %v899 = vld [vmem:[#allocation11 + $0x174] sm:$0xf]
    %v900 = vld [vmem:[#allocation11 + $0x178] sm:$0xf]
    %v901 = vld [vmem:[#allocation11 + $0x17c] sm:$0xf]
    %v902 = vld [vmem:[#allocation11 + $0x180] sm:$0xf]
    %v903 = vld [vmem:[#allocation11 + $0x184] sm:$0xf]
    %v904 = vld [vmem:[#allocation11 + $0x188] sm:$0xf]
    %v905 = vld [vmem:[#allocation11 + $0x18c] sm:$0xf]
    %v906 = vld [vmem:[#allocation11 + $0x190] sm:$0xf]
    %v907 = vld [vmem:[#allocation11 + $0x194] sm:$0xf]
    %v908 = vld [vmem:[#allocation11 + $0x198] sm:$0xf]
    %v909 = vld [vmem:[#allocation11 + $0x19c] sm:$0xf]
    %v910 = vld [vmem:[#allocation11 + $0x1a0] sm:$0xf]
    %v911 = vld [vmem:[#allocation11 + $0x1a4] sm:$0xf]
    %v912 = vld [vmem:[#allocation11 + $0x1a8] sm:$0xf]
    %v913 = vld [vmem:[#allocation11 + $0x1ac] sm:$0xf]
    %v914 = vld [vmem:[#allocation11 + $0x1b0] sm:$0xf]
    %v915 = vld [vmem:[#allocation11 + $0x1b4] sm:$0xf]
    %v916 = vld [vmem:[#allocation11 + $0x1b8] sm:$0xf]
    %v917 = vld [vmem:[#allocation11 + $0x1bc] sm:$0xf]
    %v918 = vld [vmem:[#allocation11 + $0x1c0] sm:$0xf]
    %v919 = vld [vmem:[#allocation11 + $0x1c4] sm:$0xf]
    %v920 = vld [vmem:[#allocation11 + $0x1c8] sm:$0xf]
    %v921 = vld [vmem:[#allocation11 + $0x1cc] sm:$0xf]
    %v922 = vld [vmem:[#allocation11 + $0x1d0] sm:$0xf]
    %v923 = vld [vmem:[#allocation11 + $0x1d4] sm:$0xf]
    %v924 = vld [vmem:[#allocation11 + $0x1d8] sm:$0xf]
    %v925 = vld [vmem:[#allocation11 + $0x1dc] sm:$0xf]
    %v926 = vld [vmem:[#allocation11 + $0x1e0] sm:$0xf]
    %v927 = vld [vmem:[#allocation11 + $0x1e4] sm:$0xf]
    %v928 = vld [vmem:[#allocation11 + $0x1e8] sm:$0xf]
    %v929 = vld [vmem:[#allocation11 + $0x1ec] sm:$0xf]
    %v930 = vld [vmem:[#allocation11 + $0x1f0] sm:$0xf]
    %v931 = vld [vmem:[#allocation11 + $0x1f4] sm:$0xf]
    %v932 = vld [vmem:[#allocation11 + $0x1f8] sm:$0xf]
    %v933 = vld [vmem:[#allocation11 + $0x1fc] sm:$0xf]
    %v934 = vld [vmem:[#allocation11 + $0x200] sm:$0xf]
    %v935 = vld [vmem:[#allocation11 + $0x204] sm:$0xf]
    %v936 = vld [vmem:[#allocation11 + $0x208] sm:$0xf]
    %v937 = vld [vmem:[#allocation11 + $0x20c] sm:$0xf]
    %v938 = vld [vmem:[#allocation11 + $0x210] sm:$0xf]
    %v939 = vld [vmem:[#allocation11 + $0x214] sm:$0xf]
    %v940 = vld [vmem:[#allocation11 + $0x218] sm:$0xf]
    %v941 = vld [vmem:[#allocation11 + $0x21c] sm:$0xf]
    %v942 = vld [vmem:[#allocation11 + $0x220] sm:$0xf]
    %v943 = vld [vmem:[#allocation11 + $0x224] sm:$0xf]
    %v944 = vld [vmem:[#allocation11 + $0x228] sm:$0xf]
    %v945 = vld [vmem:[#allocation11 + $0x22c] sm:$0xf]
    %v946 = vld [vmem:[#allocation11 + $0x230] sm:$0xf]
    %v947 = vld [vmem:[#allocation11 + $0x234] sm:$0xf]
    %v948 = vld [vmem:[#allocation11 + $0x238] sm:$0xf]
    %v949 = vld [vmem:[#allocation11 + $0x23c] sm:$0xf]
    %v950 = vld [vmem:[#allocation11 + $0x240] sm:$0xf]
    %v951 = vld [vmem:[#allocation11 + $0x244] sm:$0xf]
    %v952 = vld [vmem:[#allocation11 + $0x248] sm:$0xf]
    %v953 = vld [vmem:[#allocation11 + $0x24c] sm:$0xf]
    %v954 = vld [vmem:[#allocation11 + $0x250] sm:$0xf]
    %v955 = vld [vmem:[#allocation11 + $0x254] sm:$0xf]
    %v956 = vld [vmem:[#allocation11 + $0x258] sm:$0xf]
    %v957 = vld [vmem:[#allocation11 + $0x25c] sm:$0xf]
    %v958 = vld [vmem:[#allocation11 + $0x260] sm:$0xf]
    %v959 = vld [vmem:[#allocation11 + $0x264] sm:$0xf]
    %v960 = vld [vmem:[#allocation11 + $0x268] sm:$0xf]
    %v961 = vld [vmem:[#allocation11 + $0x26c] sm:$0xf]
    %v962 = vld [vmem:[#allocation11 + $0x270] sm:$0xf]
    %v963 = vld [vmem:[#allocation11 + $0x274] sm:$0xf]
    %v964 = vld [vmem:[#allocation11 + $0x278] sm:$0xf]
    %v965 = vld [vmem:[#allocation11 + $0x27c] sm:$0xf]
    %v966 = vld [vmem:[#allocation11 + $0x280] sm:$0xf]
    %v967 = vld [vmem:[#allocation11 + $0x284] sm:$0xf]
    %v968 = vld [vmem:[#allocation11 + $0x288] sm:$0xf]
    %v969 = vld [vmem:[#allocation11 + $0x28c] sm:$0xf]
    %v970 = vld [vmem:[#allocation11 + $0x290] sm:$0xf]
    %v971 = vld [vmem:[#allocation11 + $0x294] sm:$0xf]
    %v972 = vld [vmem:[#allocation11 + $0x298] sm:$0xf]
    %v973 = vld [vmem:[#allocation11 + $0x29c] sm:$0xf]
    %v974 = vld [vmem:[#allocation11 + $0x2a0] sm:$0xf]
    %v975 = vld [vmem:[#allocation11 + $0x2a4] sm:$0xf]
    %v976 = vld [vmem:[#allocation11 + $0x2a8] sm:$0xf]
    %v977 = vld [vmem:[#allocation11 + $0x2ac] sm:$0xf]
    %v978 = vld [vmem:[#allocation11 + $0x2b0] sm:$0xf]
    %v979 = vld [vmem:[#allocation11 + $0x2b4] sm:$0xf]
    %v980 = vld [vmem:[#allocation11 + $0x2b8] sm:$0xf]
    %v981 = vld [vmem:[#allocation11 + $0x2bc] sm:$0xf]
    %v982 = vld [vmem:[#allocation11 + $0x2c0] sm:$0xf]
    %v983 = vld [vmem:[#allocation11 + $0x2c4] sm:$0xf]
    %v984 = vld [vmem:[#allocation11 + $0x2c8] sm:$0xf]
    %v985 = vld [vmem:[#allocation11 + $0x2cc] sm:$0xf]
    %v986 = vld [vmem:[#allocation11 + $0x2d0] sm:$0xf]
    %v987 = vld [vmem:[#allocation11 + $0x2d4] sm:$0xf]
    %v988 = vld [vmem:[#allocation11 + $0x2d8] sm:$0xf]
    %v989 = vld [vmem:[#allocation11 + $0x2dc] sm:$0xf]
    %v990 = vld [vmem:[#allocation11 + $0x2e0] sm:$0xf]
    %v991 = vld [vmem:[#allocation11 + $0x2e4] sm:$0xf]
    %v992 = vld [vmem:[#allocation11 + $0x2e8] sm:$0xf]
    %v993 = vld [vmem:[#allocation11 + $0x2ec] sm:$0xf]
    %v994 = vld [vmem:[#allocation11 + $0x2f0] sm:$0xf]
    %v995 = vld [vmem:[#allocation11 + $0x2f4] sm:$0xf]
    %v996 = vld [vmem:[#allocation11 + $0x2f8] sm:$0xf]
    %v997 = vld [vmem:[#allocation11 + $0x2fc] sm:$0xf]
    %v998 = vld [vmem:[%s8] sm:$0x1]
    %v1000 = vlaneseq
    %v1001 = vshrl.u32 %v1000, 7
    %v1002 = vsub.s32 0, %v1001
    %v1003 = vrot.slane %v998, %v1002
    %v1197 = vunpack.c.l.b16 %v806
    %v1198 = vunpack.c.l.b16 %v807
    %v1199 = vunpack.c.l.b16 %v808
    %v1200 = vunpack.c.l.b16 %v809
    %v1201 = vunpack.c.l.b16 %v810
    %v1202 = vunpack.c.l.b16 %v811
    %v1203 = vunpack.c.l.b16 %v812
    %v1204 = vunpack.c.l.b16 %v813
    %v1205 = vunpack.c.l.b16 %v814
    %v1206 = vunpack.c.l.b16 %v815
    %v1207 = vunpack.c.l.b16 %v816
    %v1208 = vunpack.c.l.b16 %v817
    %v1209 = vunpack.c.l.b16 %v818
    %v1210 = vunpack.c.l.b16 %v819
    %v1211 = vunpack.c.l.b16 %v820
    %v1212 = vunpack.c.l.b16 %v821
    %v1213 = vunpack.c.l.b16 %v822
    %v1214 = vunpack.c.l.b16 %v823
    %v1215 = vunpack.c.l.b16 %v824
    %v1216 = vunpack.c.l.b16 %v825
    %v1217 = vunpack.c.l.b16 %v826
    %v1218 = vunpack.c.l.b16 %v827
    %v1219 = vunpack.c.l.b16 %v828
    %v1220 = vunpack.c.l.b16 %v829
    %v1221 = vunpack.c.l.b16 %v830
    %v1222 = vunpack.c.l.b16 %v831
    %v1223 = vunpack.c.l.b16 %v832
    %v1224 = vunpack.c.l.b16 %v833
    %v1225 = vunpack.c.l.b16 %v834
    %v1226 = vunpack.c.l.b16 %v835
    %v1227 = vunpack.c.l.b16 %v836
    %v1228 = vunpack.c.l.b16 %v837
    %v1229 = vunpack.c.l.b16 %v838
    %v1230 = vunpack.c.l.b16 %v839
    %v1231 = vunpack.c.l.b16 %v840
    %v1232 = vunpack.c.l.b16 %v841
    %v1233 = vunpack.c.l.b16 %v842
    %v1234 = vunpack.c.l.b16 %v843
    %v1235 = vunpack.c.l.b16 %v844
    %v1236 = vunpack.c.l.b16 %v845
    %v1237 = vunpack.c.l.b16 %v846
    %v1238 = vunpack.c.l.b16 %v847
    %v1239 = vunpack.c.l.b16 %v848
    %v1240 = vunpack.c.l.b16 %v849
    %v1241 = vunpack.c.l.b16 %v850
    %v1242 = vunpack.c.l.b16 %v851
    %v1243 = vunpack.c.l.b16 %v852
    %v1244 = vunpack.c.l.b16 %v853
    %v1245 = vunpack.c.l.b16 %v854
    %v1246 = vunpack.c.l.b16 %v855
    %v1247 = vunpack.c.l.b16 %v856
    %v1248 = vunpack.c.l.b16 %v857
    %v1249 = vunpack.c.l.b16 %v858
    %v1250 = vunpack.c.l.b16 %v859
    %v1251 = vunpack.c.l.b16 %v860
    %v1252 = vunpack.c.l.b16 %v861
    %v1253 = vunpack.c.l.b16 %v862
    %v1254 = vunpack.c.l.b16 %v863
    %v1255 = vunpack.c.l.b16 %v864
    %v1256 = vunpack.c.l.b16 %v865
    %v1257 = vunpack.c.l.b16 %v866
    %v1258 = vunpack.c.l.b16 %v867
    %v1259 = vunpack.c.l.b16 %v868
    %v1260 = vunpack.c.l.b16 %v869
    %v1261 = vunpack.c.l.b16 %v870
    %v1262 = vunpack.c.l.b16 %v871
    %v1263 = vunpack.c.l.b16 %v872
    %v1264 = vunpack.c.l.b16 %v873
    %v1265 = vunpack.c.l.b16 %v874
    %v1266 = vunpack.c.l.b16 %v875
    %v1267 = vunpack.c.l.b16 %v876
    %v1268 = vunpack.c.l.b16 %v877
    %v1269 = vunpack.c.l.b16 %v878
    %v1270 = vunpack.c.l.b16 %v879
    %v1271 = vunpack.c.l.b16 %v880
    %v1272 = vunpack.c.l.b16 %v881
    %v1273 = vunpack.c.l.b16 %v882
    %v1274 = vunpack.c.l.b16 %v883
    %v1275 = vunpack.c.l.b16 %v884
    %v1276 = vunpack.c.l.b16 %v885
    %v1277 = vunpack.c.l.b16 %v886
    %v1278 = vunpack.c.l.b16 %v887
    %v1279 = vunpack.c.l.b16 %v888
    %v1280 = vunpack.c.l.b16 %v889
    %v1281 = vunpack.c.l.b16 %v890
    %v1282 = vunpack.c.l.b16 %v891
    %v1283 = vunpack.c.l.b16 %v892
    %v1284 = vunpack.c.l.b16 %v893
    %v1285 = vunpack.c.l.b16 %v894
    %v1286 = vunpack.c.l.b16 %v895
    %v1287 = vunpack.c.l.b16 %v896
    %v1288 = vunpack.c.l.b16 %v897
    %v1289 = vunpack.c.l.b16 %v898
    %v1290 = vunpack.c.l.b16 %v899
    %v1291 = vunpack.c.l.b16 %v900
    %v1292 = vunpack.c.l.b16 %v901
    %v1293 = vunpack.c.l.b16 %v902
    %v1294 = vunpack.c.l.b16 %v903
    %v1295 = vunpack.c.l.b16 %v904
    %v1296 = vunpack.c.l.b16 %v905
    %v1297 = vunpack.c.l.b16 %v906
    %v1298 = vunpack.c.l.b16 %v907
    %v1299 = vunpack.c.l.b16 %v908
    %v1300 = vunpack.c.l.b16 %v909
    %v1301 = vunpack.c.l.b16 %v910
    %v1302 = vunpack.c.l.b16 %v911
    %v1303 = vunpack.c.l.b16 %v912
    %v1304 = vunpack.c.l.b16 %v913
    %v1305 = vunpack.c.l.b16 %v914
    %v1306 = vunpack.c.l.b16 %v915
    %v1307 = vunpack.c.l.b16 %v916
    %v1308 = vunpack.c.l.b16 %v917
    %v1309 = vunpack.c.l.b16 %v918
    %v1310 = vunpack.c.l.b16 %v919
    %v1311 = vunpack.c.l.b16 %v920
    %v1312 = vunpack.c.l.b16 %v921
    %v1313 = vunpack.c.l.b16 %v922
    %v1314 = vunpack.c.l.b16 %v923
    %v1315 = vunpack.c.l.b16 %v924
    %v1316 = vunpack.c.l.b16 %v925
    %v1317 = vunpack.c.l.b16 %v926
    %v1318 = vunpack.c.l.b16 %v927
    %v1319 = vunpack.c.l.b16 %v928
    %v1320 = vunpack.c.l.b16 %v929
    %v1321 = vunpack.c.l.b16 %v930
    %v1322 = vunpack.c.l.b16 %v931
    %v1323 = vunpack.c.l.b16 %v932
    %v1324 = vunpack.c.l.b16 %v933
    %v1325 = vunpack.c.l.b16 %v934
    %v1326 = vunpack.c.l.b16 %v935
    %v1327 = vunpack.c.l.b16 %v936
    %v1328 = vunpack.c.l.b16 %v937
    %v1329 = vunpack.c.l.b16 %v938
    %v1330 = vunpack.c.l.b16 %v939
    %v1331 = vunpack.c.l.b16 %v940
    %v1332 = vunpack.c.l.b16 %v941
    %v1333 = vunpack.c.l.b16 %v942
    %v1334 = vunpack.c.l.b16 %v943
    %v1335 = vunpack.c.l.b16 %v944
    %v1336 = vunpack.c.l.b16 %v945
    %v1337 = vunpack.c.l.b16 %v946
    %v1338 = vunpack.c.l.b16 %v947
    %v1339 = vunpack.c.l.b16 %v948
    %v1340 = vunpack.c.l.b16 %v949
    %v1341 = vunpack.c.l.b16 %v950
    %v1342 = vunpack.c.l.b16 %v951
    %v1343 = vunpack.c.l.b16 %v952
    %v1344 = vunpack.c.l.b16 %v953
    %v1345 = vunpack.c.l.b16 %v954
    %v1346 = vunpack.c.l.b16 %v955
    %v1347 = vunpack.c.l.b16 %v956
    %v1348 = vunpack.c.l.b16 %v957
    %v1349 = vunpack.c.l.b16 %v958
    %v1350 = vunpack.c.l.b16 %v959
    %v1351 = vunpack.c.l.b16 %v960
    %v1352 = vunpack.c.l.b16 %v961
    %v1353 = vunpack.c.l.b16 %v962
    %v1354 = vunpack.c.l.b16 %v963
    %v1355 = vunpack.c.l.b16 %v964
    %v1356 = vunpack.c.l.b16 %v965
    %v1357 = vunpack.c.l.b16 %v966
    %v1358 = vunpack.c.l.b16 %v967
    %v1359 = vunpack.c.l.b16 %v968
    %v1360 = vunpack.c.l.b16 %v969
    %v1361 = vunpack.c.l.b16 %v970
    %v1362 = vunpack.c.l.b16 %v971
    %v1363 = vunpack.c.l.b16 %v972
    %v1364 = vunpack.c.l.b16 %v973
    %v1365 = vunpack.c.l.b16 %v974
    %v1366 = vunpack.c.l.b16 %v975
    %v1367 = vunpack.c.l.b16 %v976
    %v1368 = vunpack.c.l.b16 %v977
    %v1369 = vunpack.c.l.b16 %v978
    %v1370 = vunpack.c.l.b16 %v979
    %v1371 = vunpack.c.l.b16 %v980
    %v1372 = vunpack.c.l.b16 %v981
    %v1373 = vunpack.c.l.b16 %v982
    %v1374 = vunpack.c.l.b16 %v983
    %v1375 = vunpack.c.l.b16 %v984
    %v1376 = vunpack.c.l.b16 %v985
    %v1377 = vunpack.c.l.b16 %v986
    %v1378 = vunpack.c.l.b16 %v987
    %v1379 = vunpack.c.l.b16 %v988
    %v1380 = vunpack.c.l.b16 %v989
    %v1381 = vunpack.c.l.b16 %v990
    %v1382 = vunpack.c.l.b16 %v991
    %v1383 = vunpack.c.l.b16 %v992
    %v1384 = vunpack.c.l.b16 %v993
    %v1385 = vunpack.c.l.b16 %v994
    %v1386 = vunpack.c.l.b16 %v995
    %v1387 = vunpack.c.l.b16 %v996
    %v1388 = vunpack.c.l.b16 %v997
    %v1389 = vpack.c.b16 %v1198, %v1197
    %v1390 = vpack.c.b16 %v1200, %v1199
    %v1391 = vpack.c.b16 %v1202, %v1201
    %v1392 = vpack.c.b16 %v1204, %v1203
    %v1393 = vpack.c.b16 %v1206, %v1205
    %v1394 = vpack.c.b16 %v1208, %v1207
    %v1395 = vpack.c.b16 %v1210, %v1209
    %v1396 = vpack.c.b16 %v1212, %v1211
    %v1397 = vpack.c.b16 %v1214, %v1213
    %v1398 = vpack.c.b16 %v1216, %v1215
    %v1399 = vpack.c.b16 %v1218, %v1217
    %v1400 = vpack.c.b16 %v1220, %v1219
    %v1401 = vpack.c.b16 %v1222, %v1221
    %v1402 = vpack.c.b16 %v1224, %v1223
    %v1403 = vpack.c.b16 %v1226, %v1225
    %v1404 = vpack.c.b16 %v1228, %v1227
    %v1405 = vpack.c.b16 %v1230, %v1229
    %v1406 = vpack.c.b16 %v1232, %v1231
    %v1407 = vpack.c.b16 %v1234, %v1233
    %v1408 = vpack.c.b16 %v1236, %v1235
    %v1409 = vpack.c.b16 %v1238, %v1237
    %v1410 = vpack.c.b16 %v1240, %v1239
    %v1411 = vpack.c.b16 %v1242, %v1241
    %v1412 = vpack.c.b16 %v1244, %v1243
    %v1413 = vpack.c.b16 %v1246, %v1245
    %v1414 = vpack.c.b16 %v1248, %v1247
    %v1415 = vpack.c.b16 %v1250, %v1249
    %v1416 = vpack.c.b16 %v1252, %v1251
    %v1417 = vpack.c.b16 %v1254, %v1253
    %v1418 = vpack.c.b16 %v1256, %v1255
    %v1419 = vpack.c.b16 %v1258, %v1257
    %v1420 = vpack.c.b16 %v1260, %v1259
    %v1421 = vpack.c.b16 %v1262, %v1261
    %v1422 = vpack.c.b16 %v1264, %v1263
    %v1423 = vpack.c.b16 %v1266, %v1265
    %v1424 = vpack.c.b16 %v1268, %v1267
    %v1425 = vpack.c.b16 %v1270, %v1269
    %v1426 = vpack.c.b16 %v1272, %v1271
    %v1427 = vpack.c.b16 %v1274, %v1273
    %v1428 = vpack.c.b16 %v1276, %v1275
    %v1429 = vpack.c.b16 %v1278, %v1277
    %v1430 = vpack.c.b16 %v1280, %v1279
    %v1431 = vpack.c.b16 %v1282, %v1281
    %v1432 = vpack.c.b16 %v1284, %v1283
    %v1433 = vpack.c.b16 %v1286, %v1285
    %v1434 = vpack.c.b16 %v1288, %v1287
    %v1435 = vpack.c.b16 %v1290, %v1289
    %v1436 = vpack.c.b16 %v1292, %v1291
    %v1437 = vpack.c.b16 %v1294, %v1293
    %v1438 = vpack.c.b16 %v1296, %v1295
    %v1439 = vpack.c.b16 %v1298, %v1297
    %v1440 = vpack.c.b16 %v1300, %v1299
    %v1441 = vpack.c.b16 %v1302, %v1301
    %v1442 = vpack.c.b16 %v1304, %v1303
    %v1443 = vpack.c.b16 %v1306, %v1305
    %v1444 = vpack.c.b16 %v1308, %v1307
    %v1445 = vpack.c.b16 %v1310, %v1309
    %v1446 = vpack.c.b16 %v1312, %v1311
    %v1447 = vpack.c.b16 %v1314, %v1313
    %v1448 = vpack.c.b16 %v1316, %v1315
    %v1449 = vpack.c.b16 %v1318, %v1317
    %v1450 = vpack.c.b16 %v1320, %v1319
    %v1451 = vpack.c.b16 %v1322, %v1321
    %v1452 = vpack.c.b16 %v1324, %v1323
    %v1453 = vpack.c.b16 %v1326, %v1325
    %v1454 = vpack.c.b16 %v1328, %v1327
    %v1455 = vpack.c.b16 %v1330, %v1329
    %v1456 = vpack.c.b16 %v1332, %v1331
    %v1457 = vpack.c.b16 %v1334, %v1333
    %v1458 = vpack.c.b16 %v1336, %v1335
    %v1459 = vpack.c.b16 %v1338, %v1337
    %v1460 = vpack.c.b16 %v1340, %v1339
    %v1461 = vpack.c.b16 %v1342, %v1341
    %v1462 = vpack.c.b16 %v1344, %v1343
    %v1463 = vpack.c.b16 %v1346, %v1345
    %v1464 = vpack.c.b16 %v1348, %v1347
    %v1465 = vpack.c.b16 %v1350, %v1349
    %v1466 = vpack.c.b16 %v1352, %v1351
    %v1467 = vpack.c.b16 %v1354, %v1353
    %v1468 = vpack.c.b16 %v1356, %v1355
    %v1469 = vpack.c.b16 %v1358, %v1357
    %v1470 = vpack.c.b16 %v1360, %v1359
    %v1471 = vpack.c.b16 %v1362, %v1361
    %v1472 = vpack.c.b16 %v1364, %v1363
    %v1473 = vpack.c.b16 %v1366, %v1365
    %v1474 = vpack.c.b16 %v1368, %v1367
    %v1475 = vpack.c.b16 %v1370, %v1369
    %v1476 = vpack.c.b16 %v1372, %v1371
    %v1477 = vpack.c.b16 %v1374, %v1373
    %v1478 = vpack.c.b16 %v1376, %v1375
    %v1479 = vpack.c.b16 %v1378, %v1377
    %v1480 = vpack.c.b16 %v1380, %v1379
    %v1481 = vpack.c.b16 %v1382, %v1381
    %v1482 = vpack.c.b16 %v1384, %v1383
    %v1483 = vpack.c.b16 %v1386, %v1385
    %v1484 = vpack.c.b16 %v1388, %v1387
    %1581 = vmatprep.subr.bf16.mxu0 0
    %1582 = vmatpush1.bf16.msra.mxu0 %v1389
    %1583 = vmatprep.subr.bf16.mxu0 0
    %1584 = vmatpush1.bf16.msra.mxu0 %v1390
    %1585 = vmatprep.subr.bf16.mxu0 0
    %1586 = vmatpush1.bf16.msra.mxu0 %v1391
    %1587 = vmatprep.subr.bf16.mxu0 0
    %1588 = vmatpush1.bf16.msra.mxu0 %v1392
    %1589 = vmatprep.subr.bf16.mxu0 0
    %1590 = vmatpush1.bf16.msra.mxu0 %v1393
    %1591 = vmatprep.subr.bf16.mxu0 0
    %1592 = vmatpush1.bf16.msra.mxu0 %v1394
    %1593 = vmatprep.subr.bf16.mxu0 0
    %1594 = vmatpush1.bf16.msra.mxu0 %v1395
    %1595 = vmatprep.subr.bf16.mxu0 0
    %1596 = vmatpush1.bf16.msra.mxu0 %v1396
    %1597 = vmatprep.subr.bf16.mxu0 0
    %1598 = vmatpush1.bf16.msra.mxu0 %v1397
    %1599 = vmatprep.subr.bf16.mxu0 0
    %1600 = vmatpush1.bf16.msra.mxu0 %v1398
    %1601 = vmatprep.subr.bf16.mxu0 0
    %1602 = vmatpush1.bf16.msra.mxu0 %v1399
    %1603 = vmatprep.subr.bf16.mxu0 0
    %1604 = vmatpush1.bf16.msra.mxu0 %v1400
    %1605 = vmatprep.subr.bf16.mxu0 0
    %1606 = vmatpush1.bf16.msra.mxu0 %v1401
    %1607 = vmatprep.subr.bf16.mxu0 0
    %1608 = vmatpush1.bf16.msra.mxu0 %v1402
    %1609 = vmatprep.subr.bf16.mxu0 0
    %1610 = vmatpush1.bf16.msra.mxu0 %v1403
    %1611 = vmatprep.subr.bf16.mxu0 0
    %1612 = vmatpush1.bf16.msra.mxu0 %v1404
    %1613 = vmatprep.mubr.bf16.mxu0 %v795
    %1614 = vmatmul.mubr.bf16.gmra.mrb[0].mxu0 %v794
    %v1615 = vpop.f32.mrb[0].mxu0
    %v1616 = vadd.f32 %v1003, %v1615
    %v1617 = vpop.f32.mrb[0].mxu0
    %v1618 = vpop.f32.mrb[0].mxu0
    %v1619 = vpop.f32.mrb[0].mxu0
    %1620 = vdwg.mxu0
    %1621 = vmatprep.subr.bf16.mxu0 0
    %1622 = vmatpush1.bf16.msra.mxu0 %v1405
    %1623 = vmatprep.subr.bf16.mxu0 0
    %1624 = vmatpush1.bf16.msra.mxu0 %v1406
    %1625 = vmatprep.subr.bf16.mxu0 0
    %1626 = vmatpush1.bf16.msra.mxu0 %v1407
    %1627 = vmatprep.subr.bf16.mxu0 0
    %1628 = vmatpush1.bf16.msra.mxu0 %v1408
    %1629 = vmatprep.subr.bf16.mxu0 0
    %1630 = vmatpush1.bf16.msra.mxu0 %v1409
    %1631 = vmatprep.subr.bf16.mxu0 0
    %1632 = vmatpush1.bf16.msra.mxu0 %v1410
    %1633 = vmatprep.subr.bf16.mxu0 0
    %1634 = vmatpush1.bf16.msra.mxu0 %v1411
    %1635 = vmatprep.subr.bf16.mxu0 0
    %1636 = vmatpush1.bf16.msra.mxu0 %v1412
    %1637 = vmatprep.subr.bf16.mxu0 0
    %1638 = vmatpush1.bf16.msra.mxu0 %v1413
    %1639 = vmatprep.subr.bf16.mxu0 0
    %1640 = vmatpush1.bf16.msra.mxu0 %v1414
    %1641 = vmatprep.subr.bf16.mxu0 0
    %1642 = vmatpush1.bf16.msra.mxu0 %v1415
    %1643 = vmatprep.subr.bf16.mxu0 0
    %1644 = vmatpush1.bf16.msra.mxu0 %v1416
    %1645 = vmatprep.subr.bf16.mxu0 0
    %1646 = vmatpush1.bf16.msra.mxu0 %v1417
    %1647 = vmatprep.subr.bf16.mxu0 0
    %1648 = vmatpush1.bf16.msra.mxu0 %v1418
    %1649 = vmatprep.subr.bf16.mxu0 0
    %1650 = vmatpush1.bf16.msra.mxu0 %v1419
    %1651 = vmatprep.subr.bf16.mxu0 0
    %1652 = vmatpush1.bf16.msra.mxu0 %v1420
    %1653 = vmatprep.mubr.bf16.mxu0 %v797
    %1654 = vmatmul.mubr.bf16.gmra.mrb[0].mxu0 %v796
    %v1655 = vpop.f32.mrb[0].mxu0
    %v1656 = vadd.f32 %v1616, %v1655
    %v1657 = vpop.f32.mrb[0].mxu0
    %v1658 = vpop.f32.mrb[0].mxu0
    %v1659 = vpop.f32.mrb[0].mxu0
    %1660 = vdwg.mxu0
    %1661 = vmatprep.subr.bf16.mxu0 0
    %1662 = vmatpush1.bf16.msra.mxu0 %v1421
    %1663 = vmatprep.subr.bf16.mxu0 0
    %1664 = vmatpush1.bf16.msra.mxu0 %v1422
    %1665 = vmatprep.subr.bf16.mxu0 0
    %1666 = vmatpush1.bf16.msra.mxu0 %v1423
    %1667 = vmatprep.subr.bf16.mxu0 0
    %1668 = vmatpush1.bf16.msra.mxu0 %v1424
    %1669 = vmatprep.subr.bf16.mxu0 0
    %1670 = vmatpush1.bf16.msra.mxu0 %v1425
    %1671 = vmatprep.subr.bf16.mxu0 0
    %1672 = vmatpush1.bf16.msra.mxu0 %v1426
    %1673 = vmatprep.subr.bf16.mxu0 0
    %1674 = vmatpush1.bf16.msra.mxu0 %v1427
    %1675 = vmatprep.subr.bf16.mxu0 0
    %1676 = vmatpush1.bf16.msra.mxu0 %v1428
    %1677 = vmatprep.subr.bf16.mxu0 0
    %1678 = vmatpush1.bf16.msra.mxu0 %v1429
    %1679 = vmatprep.subr.bf16.mxu0 0
    %1680 = vmatpush1.bf16.msra.mxu0 %v1430
    %1681 = vmatprep.subr.bf16.mxu0 0
    %1682 = vmatpush1.bf16.msra.mxu0 %v1431
    %1683 = vmatprep.subr.bf16.mxu0 0
    %1684 = vmatpush1.bf16.msra.mxu0 %v1432
    %1685 = vmatprep.subr.bf16.mxu0 0
    %1686 = vmatpush1.bf16.msra.mxu0 %v1433
    %1687 = vmatprep.subr.bf16.mxu0 0
    %1688 = vmatpush1.bf16.msra.mxu0 %v1434
    %1689 = vmatprep.subr.bf16.mxu0 0
    %1690 = vmatpush1.bf16.msra.mxu0 %v1435
    %1691 = vmatprep.subr.bf16.mxu0 0
    %1692 = vmatpush1.bf16.msra.mxu0 %v1436
    %1693 = vmatprep.mubr.bf16.mxu0 %v799
    %1694 = vmatmul.mubr.bf16.gmra.mrb[0].mxu0 %v798
    %v1695 = vpop.f32.mrb[0].mxu0
    %v1696 = vadd.f32 %v1656, %v1695
    %v1697 = vpop.f32.mrb[0].mxu0
    %v1698 = vpop.f32.mrb[0].mxu0
    %v1699 = vpop.f32.mrb[0].mxu0
    %1700 = vdwg.mxu0
    %1701 = vmatprep.subr.bf16.mxu0 0
    %1702 = vmatpush1.bf16.msra.mxu0 %v1437
    %1703 = vmatprep.subr.bf16.mxu0 0
    %1704 = vmatpush1.bf16.msra.mxu0 %v1438
    %1705 = vmatprep.subr.bf16.mxu0 0
    %1706 = vmatpush1.bf16.msra.mxu0 %v1439
    %1707 = vmatprep.subr.bf16.mxu0 0
    %1708 = vmatpush1.bf16.msra.mxu0 %v1440
    %1709 = vmatprep.subr.bf16.mxu0 0
    %1710 = vmatpush1.bf16.msra.mxu0 %v1441
    %1711 = vmatprep.subr.bf16.mxu0 0
    %1712 = vmatpush1.bf16.msra.mxu0 %v1442
    %1713 = vmatprep.subr.bf16.mxu0 0
    %1714 = vmatpush1.bf16.msra.mxu0 %v1443
    %1715 = vmatprep.subr.bf16.mxu0 0
    %1716 = vmatpush1.bf16.msra.mxu0 %v1444
    %1717 = vmatprep.subr.bf16.mxu0 0
    %1718 = vmatpush1.bf16.msra.mxu0 %v1445
    %1719 = vmatprep.subr.bf16.mxu0 0
    %1720 = vmatpush1.bf16.msra.mxu0 %v1446
    %1721 = vmatprep.subr.bf16.mxu0 0
    %1722 = vmatpush1.bf16.msra.mxu0 %v1447
    %1723 = vmatprep.subr.bf16.mxu0 0
    %1724 = vmatpush1.bf16.msra.mxu0 %v1448
    %1725 = vmatprep.subr.bf16.mxu0 0
    %1726 = vmatpush1.bf16.msra.mxu0 %v1449
    %1727 = vmatprep.subr.bf16.mxu0 0
    %1728 = vmatpush1.bf16.msra.mxu0 %v1450
    %1729 = vmatprep.subr.bf16.mxu0 0
    %1730 = vmatpush1.bf16.msra.mxu0 %v1451
    %1731 = vmatprep.subr.bf16.mxu0 0
    %1732 = vmatpush1.bf16.msra.mxu0 %v1452
    %1733 = vmatprep.mubr.bf16.mxu0 %v801
    %1734 = vmatmul.mubr.bf16.gmra.mrb[0].mxu0 %v800
    %v1735 = vpop.f32.mrb[0].mxu0
    %v1736 = vadd.f32 %v1696, %v1735
    %v1737 = vpop.f32.mrb[0].mxu0
    %v1738 = vpop.f32.mrb[0].mxu0
    %v1739 = vpop.f32.mrb[0].mxu0
    %1740 = vdwg.mxu0
    %1741 = vmatprep.subr.bf16.mxu0 0
    %1742 = vmatpush1.bf16.msra.mxu0 %v1453
    %1743 = vmatprep.subr.bf16.mxu0 0
    %1744 = vmatpush1.bf16.msra.mxu0 %v1454
    %1745 = vmatprep.subr.bf16.mxu0 0
    %1746 = vmatpush1.bf16.msra.mxu0 %v1455
    %1747 = vmatprep.subr.bf16.mxu0 0
    %1748 = vmatpush1.bf16.msra.mxu0 %v1456
    %1749 = vmatprep.subr.bf16.mxu0 0
    %1750 = vmatpush1.bf16.msra.mxu0 %v1457
    %1751 = vmatprep.subr.bf16.mxu0 0
    %1752 = vmatpush1.bf16.msra.mxu0 %v1458
    %1753 = vmatprep.subr.bf16.mxu0 0
    %1754 = vmatpush1.bf16.msra.mxu0 %v1459
    %1755 = vmatprep.subr.bf16.mxu0 0
    %1756 = vmatpush1.bf16.msra.mxu0 %v1460
    %1757 = vmatprep.subr.bf16.mxu0 0
    %1758 = vmatpush1.bf16.msra.mxu0 %v1461
    %1759 = vmatprep.subr.bf16.mxu0 0
    %1760 = vmatpush1.bf16.msra.mxu0 %v1462
    %1761 = vmatprep.subr.bf16.mxu0 0
    %1762 = vmatpush1.bf16.msra.mxu0 %v1463
    %1763 = vmatprep.subr.bf16.mxu0 0
    %1764 = vmatpush1.bf16.msra.mxu0 %v1464
    %1765 = vmatprep.subr.bf16.mxu0 0
    %1766 = vmatpush1.bf16.msra.mxu0 %v1465
    %1767 = vmatprep.subr.bf16.mxu0 0
    %1768 = vmatpush1.bf16.msra.mxu0 %v1466
    %1769 = vmatprep.subr.bf16.mxu0 0
    %1770 = vmatpush1.bf16.msra.mxu0 %v1467
    %1771 = vmatprep.subr.bf16.mxu0 0
    %1772 = vmatpush1.bf16.msra.mxu0 %v1468
    %1773 = vmatprep.mubr.bf16.mxu0 %v803
    %1774 = vmatmul.mubr.bf16.gmra.mrb[0].mxu0 %v802
    %v1775 = vpop.f32.mrb[0].mxu0
    %v1776 = vadd.f32 %v1736, %v1775
    %v1777 = vpop.f32.mrb[0].mxu0
    %v1778 = vpop.f32.mrb[0].mxu0
    %v1779 = vpop.f32.mrb[0].mxu0
    %1780 = vdwg.mxu0
    %1781 = vmatprep.subr.bf16.mxu0 0
    %1782 = vmatpush1.bf16.msra.mxu0 %v1469
    %1783 = vmatprep.subr.bf16.mxu0 0
    %1784 = vmatpush1.bf16.msra.mxu0 %v1470
    %1785 = vmatprep.subr.bf16.mxu0 0
    %1786 = vmatpush1.bf16.msra.mxu0 %v1471
    %1787 = vmatprep.subr.bf16.mxu0 0
    %1788 = vmatpush1.bf16.msra.mxu0 %v1472
    %1789 = vmatprep.subr.bf16.mxu0 0
    %1790 = vmatpush1.bf16.msra.mxu0 %v1473
    %1791 = vmatprep.subr.bf16.mxu0 0
    %1792 = vmatpush1.bf16.msra.mxu0 %v1474
    %1793 = vmatprep.subr.bf16.mxu0 0
    %1794 = vmatpush1.bf16.msra.mxu0 %v1475
    %1795 = vmatprep.subr.bf16.mxu0 0
    %1796 = vmatpush1.bf16.msra.mxu0 %v1476
    %1797 = vmatprep.subr.bf16.mxu0 0
    %1798 = vmatpush1.bf16.msra.mxu0 %v1477
    %1799 = vmatprep.subr.bf16.mxu0 0
    %1800 = vmatpush1.bf16.msra.mxu0 %v1478
    %1801 = vmatprep.subr.bf16.mxu0 0
    %1802 = vmatpush1.bf16.msra.mxu0 %v1479
    %1803 = vmatprep.subr.bf16.mxu0 0
    %1804 = vmatpush1.bf16.msra.mxu0 %v1480
    %1805 = vmatprep.subr.bf16.mxu0 0
    %1806 = vmatpush1.bf16.msra.mxu0 %v1481
    %1807 = vmatprep.subr.bf16.mxu0 0
    %1808 = vmatpush1.bf16.msra.mxu0 %v1482
    %1809 = vmatprep.subr.bf16.mxu0 0
    %1810 = vmatpush1.bf16.msra.mxu0 %v1483
    %1811 = vmatprep.subr.bf16.mxu0 0
    %1812 = vmatpush1.bf16.msra.mxu0 %v1484
    %1813 = vmatprep.mubr.bf16.mxu0 %v805
    %1814 = vmatmul.mubr.bf16.gmra.mrb[0].mxu0 %v804
    %v1815 = vpop.f32.mrb[0].mxu0
    %v1816 = vadd.f32 %v1776, %v1815
    %v1817 = vpop.f32.mrb[0].mxu0
    %v1818 = vpop.f32.mrb[0].mxu0
    %v1819 = vpop.f32.mrb[0].mxu0
    %1820 = vdwg.mxu0
    %1821 = vst [vmem:[#allocation12] sm:$0xff] %v1816
    // Predicated region
    $region58: #{tpu_custom_call.1} parent=1 // pred_check
      _
    $region59: #{tpu_custom_call.1} parent=1 // pred_check_branch
      %1823 = sbr.rel (0) target = $region61
    $region60: #{tpu_custom_call.1} parent=1 // pred_region
      %s1825 = ssub.s32 128, 128
      %1826 = vsyncadd [#allocation5], %s1825
      %s1828 = sshll.u32 [#allocation12], 4
      %s1829 = int_to_ptr.vmem [resolvable:$true] %s1828
      %1831 = dma.vmem_to_hbm [thread:$0]  %s1829, 128, %s9, [#allocation5]
    $region61: #{tpu_custom_call.1} parent=1 // pred_fallthru
      _
    // Predicated region
    $region62: #{tpu_custom_call.1} parent=1 // pred_check
      _
    $region63: #{tpu_custom_call.1} parent=1 // pred_check_branch
      %1833 = sbr.rel (0) target = $region65
    $region64: #{tpu_custom_call.1} parent=1 // pred_region
      %1834 = dma.done [#allocation5], 128
    $region65: #{tpu_custom_call.1} parent=1 // pred_fallthru
      _
    %1835 = vsyncpa [#allocation4], 1
    %1836 = vsyncpa [#allocation7], 1
    %1837 = vsyncpa [#allocation10], 1
    %1838 = vsyncpa [#allocation5], 1

</llo_original>
